<compile_context>
chip_gen: v5e
topology: v5e:2x2
jax: 0.10.0
libtpu: 0.0.40
codegen_flags: <defaults>
</compile_context>

<pallas_src>
import jax
import jax.numpy as jnp
from jax import lax
from jax.experimental import pallas as pl
from jax.experimental.pallas import tpu as pltpu


# ----------------------------- config (small) -------------------------------
HIDDEN = 32          # config.hidden_size
INTER = 64           # config.intermediate_size
NUM_LAYERS = 2       # config.num_hidden_layers
NUM_HEADS = 4        # config.num_attention_heads
HEAD_DIM = HIDDEN // NUM_HEADS
SEQ = 8              # number of patches / tokens
BATCH = 2
LN_EPS = 1e-6
SCALE = HEAD_DIM ** (-0.5)


def _layernorm(x, gamma, beta):
    # x: (S, D) f32; gamma/beta: (1, D) f32.  Biased variance (matches PyTorch).
    mean = jnp.mean(x, axis=-1, keepdims=True)
    var = jnp.mean((x - mean) ** 2, axis=-1, keepdims=True)
    inv = lax.rsqrt(var + LN_EPS)
    return (x - mean) * inv * gamma + beta


def _gelu_tanh(x):
    # PyTorch nn.functional.gelu(x, approximate='tanh')
    return 0.5 * x * (1.0 + jnp.tanh(0.7978845608028654 * (x + 0.044715 * x * x * x)))


def siglip_encoder_kernel(
    x_ref,
    ln1_g_ref, ln1_b_ref,
    wqkv_t_ref, bqkv_t_ref,
    wo_ref, bo_ref,
    ln2_g_ref, ln2_b_ref,
    w1_ref, b1_ref, w2_ref, b2_ref,
    out_ref,
):
    """One grid step = one full sequence through all NUM_LAYERS layers."""
    x = x_ref[0]  # (S, D) f32 hidden state, stays resident in registers/VMEM.

    # Static unroll over layers (NUM_LAYERS is small).  For deep stacks, switch
    # to lax.fori_loop with dynamic ref[l] indexing to bound code size.
    for l in range(NUM_LAYERS):
        # ------------------ layer_norm1 + self-attention -------------------
        residual = x
        h = _layernorm(x, ln1_g_ref[l], ln1_b_ref[l])           # (S, D) f32

        # Fused QKV projection in transposed (feature-major) orientation:
        # qkv^T = Wqkv_t @ h^T  -> (3D, S).  bf16 MXU inputs, f32 accumulation.
        h_t = h.T                                               # (D, S) f32
        qkv_t = jnp.dot(
            wqkv_t_ref[l],                                      # (3D, D) bf16
            h_t.astype(jnp.bfloat16),
            preferred_element_type=jnp.float32,
        ) + bqkv_t_ref[l]                                       # (3D, S) f32

        # Head split is a leading-dim split only (row h*HEAD_DIM + d).
        q_t = qkv_t[0 * HIDDEN:1 * HIDDEN].reshape(NUM_HEADS, HEAD_DIM, SEQ)
        k_t = qkv_t[1 * HIDDEN:2 * HIDDEN].reshape(NUM_HEADS, HEAD_DIM, SEQ)
        v_t = qkv_t[2 * HIDDEN:3 * HIDDEN].reshape(NUM_HEADS, HEAD_DIM, SEQ)

        # scores[h, i, j] = sum_d q[i,h,d] * k[j,h,d]  (head-batched matmul).
        scores = jnp.einsum(
            "hdq,hdk->hqk",
            q_t.astype(jnp.bfloat16), k_t.astype(jnp.bfloat16),
            preferred_element_type=jnp.float32,
        ) * SCALE                                               # (H, S, S) f32

        # Softmax over keys, in f32; EUP reciprocal for the normalization.
        m = jnp.max(scores, axis=-1, keepdims=True)
        e = jnp.exp(scores - m)
        denom = jnp.sum(e, axis=-1, keepdims=True)
        probs = e * pl.reciprocal(denom, approx=True)           # (H, S, S) f32
        # attention_dropout = 0.0 (eval semantics) -> identity.

        # o^T[h, d, q] = sum_t v[t,h,d] * probs[h,q,t]  (head-batched matmul).
        o_t = jnp.einsum(
            "hdt,hqt->hdq",
            v_t.astype(jnp.bfloat16), probs.astype(jnp.bfloat16),
            preferred_element_type=jnp.float32,
        )                                                       # (H, hd, S) f32

        # Merge heads (leading-dim merge) then transpose back to (S, D);
        # column index h*HEAD_DIM + d matches PyTorch's transpose+reshape order.
        attn = o_t.reshape(HIDDEN, SEQ).T                       # (S, D) f32
        attn = jnp.dot(
            attn.astype(jnp.bfloat16), wo_ref[l],               # (D, D) bf16
            preferred_element_type=jnp.float32,
        ) + bo_ref[l]
        x = residual + attn

        # ------------------------ layer_norm2 + MLP ------------------------
        residual = x
        h = _layernorm(x, ln2_g_ref[l], ln2_b_ref[l])
        h = jnp.dot(
            h.astype(jnp.bfloat16), w1_ref[l],                  # (D, I) bf16
            preferred_element_type=jnp.float32,
        ) + b1_ref[l]
        h = _gelu_tanh(h)                                       # f32 on VPU/EUP
        h = jnp.dot(
            h.astype(jnp.bfloat16), w2_ref[l],                  # (I, D) bf16
            preferred_element_type=jnp.float32,
        ) + b2_ref[l]
        x = residual + h

    out_ref[0] = x


def _const_spec(shape):
    """Whole-array block, constant across the batch grid (DMA'd once)."""
    ndim = len(shape)
    return pl.BlockSpec(shape, lambda b: (0,) * ndim)


_WEIGHT_ORDER = [
    "ln1_g", "ln1_b",
    "wqkv_t", "bqkv_t",
    "wo", "bo",
    "ln2_g", "ln2_b",
    "w1", "b1", "w2", "b2",
]


@jax.jit
def siglip_encoder(x, params):
    """SiglipEncoder.forward: x (B, S, D) f32, all layers fused in one call."""
    B, S, D = x.shape
    weights = [params[k] for k in _WEIGHT_ORDER]

    # Advisory cost estimate for the XLA scheduler.
    flops = B * NUM_LAYERS * (
        2 * S * D * 3 * D          # fused QKV projection
        + 4 * S * S * D            # QK^T and PV
        + 2 * S * D * D            # output projection
        + 4 * S * D * INTER        # fc1 + fc2
    )
    transcendentals = B * NUM_LAYERS * (
        NUM_HEADS * S * S          # exp in softmax
        + NUM_HEADS * S            # reciprocal
        + S * INTER                # tanh in GELU
        + 2 * S                    # rsqrt in the two layernorms
    )
    bytes_accessed = 2 * x.size * 4 + sum(
        int(w.size) * w.dtype.itemsize for w in weights
    )

    in_specs = [pl.BlockSpec((1, S, D), lambda b: (b, 0, 0))]
    in_specs += [_const_spec(w.shape) for w in weights]

    return pl.pallas_call(
        siglip_encoder_kernel,
        out_shape=jax.ShapeDtypeStruct((B, S, D), jnp.float32),
        grid_spec=pltpu.PrefetchScalarGridSpec(
            num_scalar_prefetch=0,
            grid=(B,),                     # batch axis: megacore-parallel on v7x
            in_specs=in_specs,
            out_specs=pl.BlockSpec((1, S, D), lambda b: (b, 0, 0)),
        ),
        compiler_params=pltpu.CompilerParams(
            dimension_semantics=("parallel",),
            vmem_limit_bytes=32 * 1024 * 1024,
        ),
        cost_estimate=pl.CostEstimate(
            flops=flops,
            transcendentals=transcendentals,
            bytes_accessed=bytes_accessed,
        ),
    )(x, *weights)


def init_params(key):
    """Synthetic weights, stacked along a leading (NUM_LAYERS, ...) axis."""
    s = 0.02
    layer_keys = jax.random.split(key, NUM_LAYERS)

    def one_layer(k):
        ks = jax.random.split(k, 6)
        wq = s * jax.random.normal(ks[0], (HIDDEN, HIDDEN), jnp.float32)  # (in, out)
        wk = s * jax.random.normal(ks[1], (HIDDEN, HIDDEN), jnp.float32)
        wv = s * jax.random.normal(ks[2], (HIDDEN, HIDDEN), jnp.float32)
        wo = s * jax.random.normal(ks[3], (HIDDEN, HIDDEN), jnp.float32)
        w1 = s * jax.random.normal(ks[4], (HIDDEN, INTER), jnp.float32)
        w2 = s * jax.random.normal(ks[5], (INTER, HIDDEN), jnp.float32)
        # Fused QKV, stored transposed (out_features, in_features) = PyTorch layout.
        wqkv_t = jnp.concatenate([wq.T, wk.T, wv.T], axis=0)               # (3D, D)
        return {
            "ln1_g": jnp.ones((1, HIDDEN), jnp.float32),
            "ln1_b": jnp.zeros((1, HIDDEN), jnp.float32),
            "wqkv_t": wqkv_t.astype(jnp.bfloat16),
            "bqkv_t": jnp.zeros((3 * HIDDEN, 1), jnp.float32),
            "wo": wo.astype(jnp.bfloat16),
            "bo": jnp.zeros((1, HIDDEN), jnp.float32),
            "ln2_g": jnp.ones((1, HIDDEN), jnp.float32),
            "ln2_b": jnp.zeros((1, HIDDEN), jnp.float32),
            "w1": w1.astype(jnp.bfloat16),
            "b1": jnp.zeros((1, INTER), jnp.float32),
            "w2": w2.astype(jnp.bfloat16),
            "b2": jnp.zeros((1, HIDDEN), jnp.float32),
        }

    layers = [one_layer(k) for k in layer_keys]
    return {name: jnp.stack([lyr[name] for lyr in layers], axis=0)
            for name in layers[0]}


if __name__ == "__main__":
    root = jax.random.PRNGKey(0)
    k_x, k_p = jax.random.split(root)

    # Deterministic example input: (B, S, D) "patch embeddings".
    x = jax.random.normal(k_x, (BATCH, SEQ, HIDDEN), jnp.float32)
    params = init_params(k_p)

    out = siglip_encoder(x, params)
    out = jax.block_until_ready(out)

    assert out.shape == (BATCH, SEQ, HIDDEN)
    assert bool(jnp.all(jnp.isfinite(out)))
    print("KERNEL_OK")
</pallas_src>

<mosaic_0001>
module attributes {stable_mosaic.version = 11 : i64} {
  func.func @siglip_encoder_kernel(%arg0: i32, %arg1: memref<1x8x32xf32, #tpu.memory_space<vmem>>, %arg2: memref<2x1x32xf32, #tpu.memory_space<vmem>>, %arg3: memref<2x1x32xf32, #tpu.memory_space<vmem>>, %arg4: memref<2x96x32xbf16, #tpu.memory_space<vmem>>, %arg5: memref<2x96x1xf32, #tpu.memory_space<vmem>>, %arg6: memref<2x32x32xbf16, #tpu.memory_space<vmem>>, %arg7: memref<2x1x32xf32, #tpu.memory_space<vmem>>, %arg8: memref<2x1x32xf32, #tpu.memory_space<vmem>>, %arg9: memref<2x1x32xf32, #tpu.memory_space<vmem>>, %arg10: memref<2x32x64xbf16, #tpu.memory_space<vmem>>, %arg11: memref<2x1x64xf32, #tpu.memory_space<vmem>>, %arg12: memref<2x64x32xbf16, #tpu.memory_space<vmem>>, %arg13: memref<2x1x32xf32, #tpu.memory_space<vmem>>, %arg14: memref<1x8x32xf32, #tpu.memory_space<vmem>>) attributes {dimension_semantics = [#tpu.dimension_semantics<parallel>], iteration_bounds = array<i64: 2>, scalar_prefetch = 0 : i64, scratch_operands = 0 : i64, tpu.core_type = #tpu.core_type<tc>, window_params = [{transform_indices = @transform_0, window_bounds = array<i64: 1, 8, 32>}, {pipeline_mode = #tpu.pipeline_mode<synchronous>, transform_indices = @transform_1, window_bounds = array<i64: 2, 1, 32>}, {pipeline_mode = #tpu.pipeline_mode<synchronous>, transform_indices = @transform_2, window_bounds = array<i64: 2, 1, 32>}, {pipeline_mode = #tpu.pipeline_mode<synchronous>, transform_indices = @transform_3, window_bounds = array<i64: 2, 96, 32>}, {pipeline_mode = #tpu.pipeline_mode<synchronous>, transform_indices = @transform_4, window_bounds = array<i64: 2, 96, 1>}, {pipeline_mode = #tpu.pipeline_mode<synchronous>, transform_indices = @transform_5, window_bounds = array<i64: 2, 32, 32>}, {pipeline_mode = #tpu.pipeline_mode<synchronous>, transform_indices = @transform_6, window_bounds = array<i64: 2, 1, 32>}, {pipeline_mode = #tpu.pipeline_mode<synchronous>, transform_indices = @transform_7, window_bounds = array<i64: 2, 1, 32>}, {pipeline_mode = #tpu.pipeline_mode<synchronous>, transform_indices = @transform_8, window_bounds = array<i64: 2, 1, 32>}, {pipeline_mode = #tpu.pipeline_mode<synchronous>, transform_indices = @transform_9, window_bounds = array<i64: 2, 32, 64>}, {pipeline_mode = #tpu.pipeline_mode<synchronous>, transform_indices = @transform_10, window_bounds = array<i64: 2, 1, 64>}, {pipeline_mode = #tpu.pipeline_mode<synchronous>, transform_indices = @transform_11, window_bounds = array<i64: 2, 64, 32>}, {pipeline_mode = #tpu.pipeline_mode<synchronous>, transform_indices = @transform_12, window_bounds = array<i64: 2, 1, 32>}, {transform_indices = @transform_13, window_bounds = array<i64: 1, 8, 32>}]} {
    %c0 = arith.constant 0 : index
    %c0_0 = arith.constant 0 : index
    %c0_1 = arith.constant 0 : index
    %0 = vector.load %arg1[%c0, %c0_0, %c0_1] : memref<1x8x32xf32, #tpu.memory_space<vmem>>, vector<1x8x32xf32>
    %1 = vector.shape_cast %0 : vector<1x8x32xf32> to vector<8x32xf32>
    %c0_2 = arith.constant 0 : index
    %c0_3 = arith.constant 0 : index
    %c0_4 = arith.constant 0 : index
    %2 = vector.load %arg2[%c0_2, %c0_3, %c0_4] : memref<2x1x32xf32, #tpu.memory_space<vmem>>, vector<1x1x32xf32>
    %3 = vector.shape_cast %2 : vector<1x1x32xf32> to vector<1x32xf32>
    %c0_5 = arith.constant 0 : index
    %c0_6 = arith.constant 0 : index
    %c0_7 = arith.constant 0 : index
    %4 = vector.load %arg3[%c0_5, %c0_6, %c0_7] : memref<2x1x32xf32, #tpu.memory_space<vmem>>, vector<1x1x32xf32>
    %5 = vector.shape_cast %4 : vector<1x1x32xf32> to vector<1x32xf32>
    %cst = arith.constant dense<0.000000e+00> : vector<8xf32>
    %6 = vector.multi_reduction <add>, %1, %cst [1] : vector<8x32xf32> to vector<8xf32>
    %7 = vector.shape_cast %6 : vector<8xf32> to vector<8x1xf32>
    %cst_8 = arith.constant 3.200000e+01 : f32
    %8 = vector.broadcast %cst_8 : f32 to vector<8x1xf32>
    %9 = arith.divf %7, %8 : vector<8x1xf32>
    %10 = vector.broadcast %9 : vector<8x1xf32> to vector<8x32xf32>
    %11 = arith.subf %1, %10 : vector<8x32xf32>
    %12 = arith.mulf %11, %11 : vector<8x32xf32>
    %cst_9 = arith.constant dense<0.000000e+00> : vector<8xf32>
    %13 = vector.multi_reduction <add>, %12, %cst_9 [1] : vector<8x32xf32> to vector<8xf32>
    %14 = vector.shape_cast %13 : vector<8xf32> to vector<8x1xf32>
    %cst_10 = arith.constant 3.200000e+01 : f32
    %15 = vector.broadcast %cst_10 : f32 to vector<8x1xf32>
    %16 = arith.divf %14, %15 : vector<8x1xf32>
    %cst_11 = arith.constant 9.99999997E-7 : f32
    %17 = vector.broadcast %cst_11 : f32 to vector<8x1xf32>
    %18 = arith.addf %16, %17 : vector<8x1xf32>
    %19 = math.rsqrt %18 : vector<8x1xf32>
    %20 = vector.broadcast %9 : vector<8x1xf32> to vector<8x32xf32>
    %21 = arith.subf %1, %20 : vector<8x32xf32>
    %22 = vector.broadcast %19 : vector<8x1xf32> to vector<8x32xf32>
    %23 = arith.mulf %21, %22 : vector<8x32xf32>
    %24 = vector.broadcast %3 : vector<1x32xf32> to vector<8x32xf32>
    %25 = arith.mulf %23, %24 : vector<8x32xf32>
    %26 = vector.broadcast %5 : vector<1x32xf32> to vector<8x32xf32>
    %27 = arith.addf %25, %26 : vector<8x32xf32>
    %28 = tpu.transpose %27, [1, 0] : vector<8x32xf32> -> vector<32x8xf32>
    %c0_12 = arith.constant 0 : index
    %c0_13 = arith.constant 0 : index
    %c0_14 = arith.constant 0 : index
    %29 = vector.load %arg4[%c0_12, %c0_13, %c0_14] : memref<2x96x32xbf16, #tpu.memory_space<vmem>>, vector<1x96x32xbf16>
    %30 = vector.shape_cast %29 : vector<1x96x32xbf16> to vector<96x32xbf16>
    %31 = arith.truncf %28 : vector<32x8xf32> to vector<32x8xbf16>
    %cst_15 = arith.constant dense<0.000000e+00> : vector<96x8xf32>
    %32 = tpu.matmul %30, %31, %cst_15 {dimension_numbers = #tpu.dot_dimension_numbers<[1], [0], [0], [1], [0, 0, 1, 1], [], []>} : vector<96x32xbf16>, vector<32x8xbf16>, vector<96x8xf32> -> vector<96x8xf32>
    %c0_16 = arith.constant 0 : index
    %c0_17 = arith.constant 0 : index
    %c0_18 = arith.constant 0 : index
    %33 = vector.load %arg5[%c0_16, %c0_17, %c0_18] : memref<2x96x1xf32, #tpu.memory_space<vmem>>, vector<1x96x1xf32>
    %34 = vector.shape_cast %33 : vector<1x96x1xf32> to vector<96x1xf32>
    %35 = vector.broadcast %34 : vector<96x1xf32> to vector<96x8xf32>
    %36 = arith.addf %32, %35 : vector<96x8xf32>
    %37 = vector.extract_strided_slice %36 {offsets = [0, 0], sizes = [32, 8], strides = [1, 1]} : vector<96x8xf32> to vector<32x8xf32>
    %38 = vector.shape_cast %37 : vector<32x8xf32> to vector<4x8x8xf32>
    %39 = vector.extract_strided_slice %36 {offsets = [32, 0], sizes = [32, 8], strides = [1, 1]} : vector<96x8xf32> to vector<32x8xf32>
    %40 = vector.shape_cast %39 : vector<32x8xf32> to vector<4x8x8xf32>
    %41 = vector.extract_strided_slice %36 {offsets = [64, 0], sizes = [32, 8], strides = [1, 1]} : vector<96x8xf32> to vector<32x8xf32>
    %42 = vector.shape_cast %41 : vector<32x8xf32> to vector<4x8x8xf32>
    %43 = arith.truncf %38 : vector<4x8x8xf32> to vector<4x8x8xbf16>
    %44 = arith.truncf %40 : vector<4x8x8xf32> to vector<4x8x8xbf16>
    "tpu.trace_start"() <{level = 10 : i32, message = "hdq,hdk->hqk"}> : () -> ()
    %cst_19 = arith.constant dense<0.000000e+00> : vector<4x8x8xf32>
    %45 = tpu.matmul %43, %44, %cst_19 {dimension_numbers = #tpu.dot_dimension_numbers<[1], [1], [2], [2], [0, 0, 0, 2, 1, 2], [0], [0]>} : vector<4x8x8xbf16>, vector<4x8x8xbf16>, vector<4x8x8xf32> -> vector<4x8x8xf32>
    "tpu.trace_stop"() : () -> ()
    %cst_20 = arith.constant 0.353553385 : f32
    %46 = vector.broadcast %cst_20 : f32 to vector<4x8x8xf32>
    %47 = arith.mulf %45, %46 : vector<4x8x8xf32>
    %cst_21 = arith.constant dense<0xFF800000> : vector<4x8xf32>
    %48 = vector.multi_reduction <maximumf>, %47, %cst_21 [2] : vector<4x8x8xf32> to vector<4x8xf32>
    %49 = vector.shape_cast %48 : vector<4x8xf32> to vector<4x8x1xf32>
    %50 = vector.broadcast %49 : vector<4x8x1xf32> to vector<4x8x8xf32>
    %51 = arith.subf %47, %50 : vector<4x8x8xf32>
    %52 = math.exp %51 : vector<4x8x8xf32>
    %cst_22 = arith.constant dense<0.000000e+00> : vector<4x8xf32>
    %53 = vector.multi_reduction <add>, %52, %cst_22 [2] : vector<4x8x8xf32> to vector<4x8xf32>
    %54 = vector.shape_cast %53 : vector<4x8xf32> to vector<4x8x1xf32>
    %55 = tpu.reciprocal %54 {approx = true} : vector<4x8x1xf32> -> vector<4x8x1xf32>
    %56 = vector.broadcast %55 : vector<4x8x1xf32> to vector<4x8x8xf32>
    %57 = arith.mulf %52, %56 : vector<4x8x8xf32>
    %58 = arith.truncf %42 : vector<4x8x8xf32> to vector<4x8x8xbf16>
    %59 = arith.truncf %57 : vector<4x8x8xf32> to vector<4x8x8xbf16>
    "tpu.trace_start"() <{level = 10 : i32, message = "hdt,hqt->hdq"}> : () -> ()
    %cst_23 = arith.constant dense<0.000000e+00> : vector<4x8x8xf32>
    %60 = tpu.matmul %58, %59, %cst_23 {dimension_numbers = #tpu.dot_dimension_numbers<[2], [2], [1], [1], [0, 0, 0, 1, 1, 1], [0], [0]>} : vector<4x8x8xbf16>, vector<4x8x8xbf16>, vector<4x8x8xf32> -> vector<4x8x8xf32>
    "tpu.trace_stop"() : () -> ()
    %61 = vector.shape_cast %60 : vector<4x8x8xf32> to vector<32x8xf32>
    %62 = tpu.transpose %61, [1, 0] : vector<32x8xf32> -> vector<8x32xf32>
    %63 = arith.truncf %62 : vector<8x32xf32> to vector<8x32xbf16>
    %c0_24 = arith.constant 0 : index
    %c0_25 = arith.constant 0 : index
    %c0_26 = arith.constant 0 : index
    %64 = vector.load %arg6[%c0_24, %c0_25, %c0_26] : memref<2x32x32xbf16, #tpu.memory_space<vmem>>, vector<1x32x32xbf16>
    %65 = vector.shape_cast %64 : vector<1x32x32xbf16> to vector<32x32xbf16>
    %cst_27 = arith.constant dense<0.000000e+00> : vector<8x32xf32>
    %66 = tpu.matmul %63, %65, %cst_27 {dimension_numbers = #tpu.dot_dimension_numbers<[1], [0], [0], [1], [0, 0, 1, 1], [], []>} : vector<8x32xbf16>, vector<32x32xbf16>, vector<8x32xf32> -> vector<8x32xf32>
    %c0_28 = arith.constant 0 : index
    %c0_29 = arith.constant 0 : index
    %c0_30 = arith.constant 0 : index
    %67 = vector.load %arg7[%c0_28, %c0_29, %c0_30] : memref<2x1x32xf32, #tpu.memory_space<vmem>>, vector<1x1x32xf32>
    %68 = vector.shape_cast %67 : vector<1x1x32xf32> to vector<1x32xf32>
    %69 = vector.broadcast %68 : vector<1x32xf32> to vector<8x32xf32>
    %70 = arith.addf %66, %69 : vector<8x32xf32>
    %71 = arith.addf %1, %70 : vector<8x32xf32>
    %c0_31 = arith.constant 0 : index
    %c0_32 = arith.constant 0 : index
    %c0_33 = arith.constant 0 : index
    %72 = vector.load %arg8[%c0_31, %c0_32, %c0_33] : memref<2x1x32xf32, #tpu.memory_space<vmem>>, vector<1x1x32xf32>
    %73 = vector.shape_cast %72 : vector<1x1x32xf32> to vector<1x32xf32>
    %c0_34 = arith.constant 0 : index
    %c0_35 = arith.constant 0 : index
    %c0_36 = arith.constant 0 : index
    %74 = vector.load %arg9[%c0_34, %c0_35, %c0_36] : memref<2x1x32xf32, #tpu.memory_space<vmem>>, vector<1x1x32xf32>
    %75 = vector.shape_cast %74 : vector<1x1x32xf32> to vector<1x32xf32>
    %cst_37 = arith.constant dense<0.000000e+00> : vector<8xf32>
    %76 = vector.multi_reduction <add>, %71, %cst_37 [1] : vector<8x32xf32> to vector<8xf32>
    %77 = vector.shape_cast %76 : vector<8xf32> to vector<8x1xf32>
    %cst_38 = arith.constant 3.200000e+01 : f32
    %78 = vector.broadcast %cst_38 : f32 to vector<8x1xf32>
    %79 = arith.divf %77, %78 : vector<8x1xf32>
    %80 = vector.broadcast %79 : vector<8x1xf32> to vector<8x32xf32>
    %81 = arith.subf %71, %80 : vector<8x32xf32>
    %82 = arith.mulf %81, %81 : vector<8x32xf32>
    %cst_39 = arith.constant dense<0.000000e+00> : vector<8xf32>
    %83 = vector.multi_reduction <add>, %82, %cst_39 [1] : vector<8x32xf32> to vector<8xf32>
    %84 = vector.shape_cast %83 : vector<8xf32> to vector<8x1xf32>
    %cst_40 = arith.constant 3.200000e+01 : f32
    %85 = vector.broadcast %cst_40 : f32 to vector<8x1xf32>
    %86 = arith.divf %84, %85 : vector<8x1xf32>
    %cst_41 = arith.constant 9.99999997E-7 : f32
    %87 = vector.broadcast %cst_41 : f32 to vector<8x1xf32>
    %88 = arith.addf %86, %87 : vector<8x1xf32>
    %89 = math.rsqrt %88 : vector<8x1xf32>
    %90 = vector.broadcast %79 : vector<8x1xf32> to vector<8x32xf32>
    %91 = arith.subf %71, %90 : vector<8x32xf32>
    %92 = vector.broadcast %89 : vector<8x1xf32> to vector<8x32xf32>
    %93 = arith.mulf %91, %92 : vector<8x32xf32>
    %94 = vector.broadcast %73 : vector<1x32xf32> to vector<8x32xf32>
    %95 = arith.mulf %93, %94 : vector<8x32xf32>
    %96 = vector.broadcast %75 : vector<1x32xf32> to vector<8x32xf32>
    %97 = arith.addf %95, %96 : vector<8x32xf32>
    %98 = arith.truncf %97 : vector<8x32xf32> to vector<8x32xbf16>
    %c0_42 = arith.constant 0 : index
    %c0_43 = arith.constant 0 : index
    %c0_44 = arith.constant 0 : index
    %99 = vector.load %arg10[%c0_42, %c0_43, %c0_44] : memref<2x32x64xbf16, #tpu.memory_space<vmem>>, vector<1x32x64xbf16>
    %100 = vector.shape_cast %99 : vector<1x32x64xbf16> to vector<32x64xbf16>
    %cst_45 = arith.constant dense<0.000000e+00> : vector<8x64xf32>
    %101 = tpu.matmul %98, %100, %cst_45 {dimension_numbers = #tpu.dot_dimension_numbers<[1], [0], [0], [1], [0, 0, 1, 1], [], []>} : vector<8x32xbf16>, vector<32x64xbf16>, vector<8x64xf32> -> vector<8x64xf32>
    %c0_46 = arith.constant 0 : index
    %c0_47 = arith.constant 0 : index
    %c0_48 = arith.constant 0 : index
    %102 = vector.load %arg11[%c0_46, %c0_47, %c0_48] : memref<2x1x64xf32, #tpu.memory_space<vmem>>, vector<1x1x64xf32>
    %103 = vector.shape_cast %102 : vector<1x1x64xf32> to vector<1x64xf32>
    %104 = vector.broadcast %103 : vector<1x64xf32> to vector<8x64xf32>
    %105 = arith.addf %101, %104 : vector<8x64xf32>
    %cst_49 = arith.constant 5.000000e-01 : f32
    %106 = vector.broadcast %cst_49 : f32 to vector<8x64xf32>
    %107 = arith.mulf %106, %105 : vector<8x64xf32>
    %cst_50 = arith.constant 4.471500e-02 : f32
    %108 = vector.broadcast %cst_50 : f32 to vector<8x64xf32>
    %109 = arith.mulf %108, %105 : vector<8x64xf32>
    %110 = arith.mulf %109, %105 : vector<8x64xf32>
    %111 = arith.mulf %110, %105 : vector<8x64xf32>
    %112 = arith.addf %105, %111 : vector<8x64xf32>
    %cst_51 = arith.constant 0.797884583 : f32
    %113 = vector.broadcast %cst_51 : f32 to vector<8x64xf32>
    %114 = arith.mulf %113, %112 : vector<8x64xf32>
    %115 = math.tanh %114 : vector<8x64xf32>
    %cst_52 = arith.constant 1.000000e+00 : f32
    %116 = vector.broadcast %cst_52 : f32 to vector<8x64xf32>
    %117 = arith.addf %116, %115 : vector<8x64xf32>
    %118 = arith.mulf %107, %117 : vector<8x64xf32>
    %119 = arith.truncf %118 : vector<8x64xf32> to vector<8x64xbf16>
    %c0_53 = arith.constant 0 : index
    %c0_54 = arith.constant 0 : index
    %c0_55 = arith.constant 0 : index
    %120 = vector.load %arg12[%c0_53, %c0_54, %c0_55] : memref<2x64x32xbf16, #tpu.memory_space<vmem>>, vector<1x64x32xbf16>
    %121 = vector.shape_cast %120 : vector<1x64x32xbf16> to vector<64x32xbf16>
    %cst_56 = arith.constant dense<0.000000e+00> : vector<8x32xf32>
    %122 = tpu.matmul %119, %121, %cst_56 {dimension_numbers = #tpu.dot_dimension_numbers<[1], [0], [0], [1], [0, 0, 1, 1], [], []>} : vector<8x64xbf16>, vector<64x32xbf16>, vector<8x32xf32> -> vector<8x32xf32>
    %c0_57 = arith.constant 0 : index
    %c0_58 = arith.constant 0 : index
    %c0_59 = arith.constant 0 : index
    %123 = vector.load %arg13[%c0_57, %c0_58, %c0_59] : memref<2x1x32xf32, #tpu.memory_space<vmem>>, vector<1x1x32xf32>
    %124 = vector.shape_cast %123 : vector<1x1x32xf32> to vector<1x32xf32>
    %125 = vector.broadcast %124 : vector<1x32xf32> to vector<8x32xf32>
    %126 = arith.addf %122, %125 : vector<8x32xf32>
    %127 = arith.addf %71, %126 : vector<8x32xf32>
    %c1 = arith.constant 1 : index
    %c0_60 = arith.constant 0 : index
    %c0_61 = arith.constant 0 : index
    %128 = vector.load %arg2[%c1, %c0_60, %c0_61] : memref<2x1x32xf32, #tpu.memory_space<vmem>>, vector<1x1x32xf32>
    %129 = vector.shape_cast %128 : vector<1x1x32xf32> to vector<1x32xf32>
    %c1_62 = arith.constant 1 : index
    %c0_63 = arith.constant 0 : index
    %c0_64 = arith.constant 0 : index
    %130 = vector.load %arg3[%c1_62, %c0_63, %c0_64] : memref<2x1x32xf32, #tpu.memory_space<vmem>>, vector<1x1x32xf32>
    %131 = vector.shape_cast %130 : vector<1x1x32xf32> to vector<1x32xf32>
    %cst_65 = arith.constant dense<0.000000e+00> : vector<8xf32>
    %132 = vector.multi_reduction <add>, %127, %cst_65 [1] : vector<8x32xf32> to vector<8xf32>
    %133 = vector.shape_cast %132 : vector<8xf32> to vector<8x1xf32>
    %cst_66 = arith.constant 3.200000e+01 : f32
    %134 = vector.broadcast %cst_66 : f32 to vector<8x1xf32>
    %135 = arith.divf %133, %134 : vector<8x1xf32>
    %136 = vector.broadcast %135 : vector<8x1xf32> to vector<8x32xf32>
    %137 = arith.subf %127, %136 : vector<8x32xf32>
    %138 = arith.mulf %137, %137 : vector<8x32xf32>
    %cst_67 = arith.constant dense<0.000000e+00> : vector<8xf32>
    %139 = vector.multi_reduction <add>, %138, %cst_67 [1] : vector<8x32xf32> to vector<8xf32>
    %140 = vector.shape_cast %139 : vector<8xf32> to vector<8x1xf32>
    %cst_68 = arith.constant 3.200000e+01 : f32
    %141 = vector.broadcast %cst_68 : f32 to vector<8x1xf32>
    %142 = arith.divf %140, %141 : vector<8x1xf32>
    %cst_69 = arith.constant 9.99999997E-7 : f32
    %143 = vector.broadcast %cst_69 : f32 to vector<8x1xf32>
    %144 = arith.addf %142, %143 : vector<8x1xf32>
    %145 = math.rsqrt %144 : vector<8x1xf32>
    %146 = vector.broadcast %135 : vector<8x1xf32> to vector<8x32xf32>
    %147 = arith.subf %127, %146 : vector<8x32xf32>
    %148 = vector.broadcast %145 : vector<8x1xf32> to vector<8x32xf32>
    %149 = arith.mulf %147, %148 : vector<8x32xf32>
    %150 = vector.broadcast %129 : vector<1x32xf32> to vector<8x32xf32>
    %151 = arith.mulf %149, %150 : vector<8x32xf32>
    %152 = vector.broadcast %131 : vector<1x32xf32> to vector<8x32xf32>
    %153 = arith.addf %151, %152 : vector<8x32xf32>
    %154 = tpu.transpose %153, [1, 0] : vector<8x32xf32> -> vector<32x8xf32>
    %c1_70 = arith.constant 1 : index
    %c0_71 = arith.constant 0 : index
    %c0_72 = arith.constant 0 : index
    %155 = vector.load %arg4[%c1_70, %c0_71, %c0_72] : memref<2x96x32xbf16, #tpu.memory_space<vmem>>, vector<1x96x32xbf16>
    %156 = vector.shape_cast %155 : vector<1x96x32xbf16> to vector<96x32xbf16>
    %157 = arith.truncf %154 : vector<32x8xf32> to vector<32x8xbf16>
    %cst_73 = arith.constant dense<0.000000e+00> : vector<96x8xf32>
    %158 = tpu.matmul %156, %157, %cst_73 {dimension_numbers = #tpu.dot_dimension_numbers<[1], [0], [0], [1], [0, 0, 1, 1], [], []>} : vector<96x32xbf16>, vector<32x8xbf16>, vector<96x8xf32> -> vector<96x8xf32>
    %c1_74 = arith.constant 1 : index
    %c0_75 = arith.constant 0 : index
    %c0_76 = arith.constant 0 : index
    %159 = vector.load %arg5[%c1_74, %c0_75, %c0_76] : memref<2x96x1xf32, #tpu.memory_space<vmem>>, vector<1x96x1xf32>
    %160 = vector.shape_cast %159 : vector<1x96x1xf32> to vector<96x1xf32>
    %161 = vector.broadcast %160 : vector<96x1xf32> to vector<96x8xf32>
    %162 = arith.addf %158, %161 : vector<96x8xf32>
    %163 = vector.extract_strided_slice %162 {offsets = [0, 0], sizes = [32, 8], strides = [1, 1]} : vector<96x8xf32> to vector<32x8xf32>
    %164 = vector.shape_cast %163 : vector<32x8xf32> to vector<4x8x8xf32>
    %165 = vector.extract_strided_slice %162 {offsets = [32, 0], sizes = [32, 8], strides = [1, 1]} : vector<96x8xf32> to vector<32x8xf32>
    %166 = vector.shape_cast %165 : vector<32x8xf32> to vector<4x8x8xf32>
    %167 = vector.extract_strided_slice %162 {offsets = [64, 0], sizes = [32, 8], strides = [1, 1]} : vector<96x8xf32> to vector<32x8xf32>
    %168 = vector.shape_cast %167 : vector<32x8xf32> to vector<4x8x8xf32>
    %169 = arith.truncf %164 : vector<4x8x8xf32> to vector<4x8x8xbf16>
    %170 = arith.truncf %166 : vector<4x8x8xf32> to vector<4x8x8xbf16>
    "tpu.trace_start"() <{level = 10 : i32, message = "hdq,hdk->hqk"}> : () -> ()
    %cst_77 = arith.constant dense<0.000000e+00> : vector<4x8x8xf32>
    %171 = tpu.matmul %169, %170, %cst_77 {dimension_numbers = #tpu.dot_dimension_numbers<[1], [1], [2], [2], [0, 0, 0, 2, 1, 2], [0], [0]>} : vector<4x8x8xbf16>, vector<4x8x8xbf16>, vector<4x8x8xf32> -> vector<4x8x8xf32>
    "tpu.trace_stop"() : () -> ()
    %cst_78 = arith.constant 0.353553385 : f32
    %172 = vector.broadcast %cst_78 : f32 to vector<4x8x8xf32>
    %173 = arith.mulf %171, %172 : vector<4x8x8xf32>
    %cst_79 = arith.constant dense<0xFF800000> : vector<4x8xf32>
    %174 = vector.multi_reduction <maximumf>, %173, %cst_79 [2] : vector<4x8x8xf32> to vector<4x8xf32>
    %175 = vector.shape_cast %174 : vector<4x8xf32> to vector<4x8x1xf32>
    %176 = vector.broadcast %175 : vector<4x8x1xf32> to vector<4x8x8xf32>
    %177 = arith.subf %173, %176 : vector<4x8x8xf32>
    %178 = math.exp %177 : vector<4x8x8xf32>
    %cst_80 = arith.constant dense<0.000000e+00> : vector<4x8xf32>
    %179 = vector.multi_reduction <add>, %178, %cst_80 [2] : vector<4x8x8xf32> to vector<4x8xf32>
    %180 = vector.shape_cast %179 : vector<4x8xf32> to vector<4x8x1xf32>
    %181 = tpu.reciprocal %180 {approx = true} : vector<4x8x1xf32> -> vector<4x8x1xf32>
    %182 = vector.broadcast %181 : vector<4x8x1xf32> to vector<4x8x8xf32>
    %183 = arith.mulf %178, %182 : vector<4x8x8xf32>
    %184 = arith.truncf %168 : vector<4x8x8xf32> to vector<4x8x8xbf16>
    %185 = arith.truncf %183 : vector<4x8x8xf32> to vector<4x8x8xbf16>
    "tpu.trace_start"() <{level = 10 : i32, message = "hdt,hqt->hdq"}> : () -> ()
    %cst_81 = arith.constant dense<0.000000e+00> : vector<4x8x8xf32>
    %186 = tpu.matmul %184, %185, %cst_81 {dimension_numbers = #tpu.dot_dimension_numbers<[2], [2], [1], [1], [0, 0, 0, 1, 1, 1], [0], [0]>} : vector<4x8x8xbf16>, vector<4x8x8xbf16>, vector<4x8x8xf32> -> vector<4x8x8xf32>
    "tpu.trace_stop"() : () -> ()
    %187 = vector.shape_cast %186 : vector<4x8x8xf32> to vector<32x8xf32>
    %188 = tpu.transpose %187, [1, 0] : vector<32x8xf32> -> vector<8x32xf32>
    %189 = arith.truncf %188 : vector<8x32xf32> to vector<8x32xbf16>
    %c1_82 = arith.constant 1 : index
    %c0_83 = arith.constant 0 : index
    %c0_84 = arith.constant 0 : index
    %190 = vector.load %arg6[%c1_82, %c0_83, %c0_84] : memref<2x32x32xbf16, #tpu.memory_space<vmem>>, vector<1x32x32xbf16>
    %191 = vector.shape_cast %190 : vector<1x32x32xbf16> to vector<32x32xbf16>
    %cst_85 = arith.constant dense<0.000000e+00> : vector<8x32xf32>
    %192 = tpu.matmul %189, %191, %cst_85 {dimension_numbers = #tpu.dot_dimension_numbers<[1], [0], [0], [1], [0, 0, 1, 1], [], []>} : vector<8x32xbf16>, vector<32x32xbf16>, vector<8x32xf32> -> vector<8x32xf32>
    %c1_86 = arith.constant 1 : index
    %c0_87 = arith.constant 0 : index
    %c0_88 = arith.constant 0 : index
    %193 = vector.load %arg7[%c1_86, %c0_87, %c0_88] : memref<2x1x32xf32, #tpu.memory_space<vmem>>, vector<1x1x32xf32>
    %194 = vector.shape_cast %193 : vector<1x1x32xf32> to vector<1x32xf32>
    %195 = vector.broadcast %194 : vector<1x32xf32> to vector<8x32xf32>
    %196 = arith.addf %192, %195 : vector<8x32xf32>
    %197 = arith.addf %127, %196 : vector<8x32xf32>
    %c1_89 = arith.constant 1 : index
    %c0_90 = arith.constant 0 : index
    %c0_91 = arith.constant 0 : index
    %198 = vector.load %arg8[%c1_89, %c0_90, %c0_91] : memref<2x1x32xf32, #tpu.memory_space<vmem>>, vector<1x1x32xf32>
    %199 = vector.shape_cast %198 : vector<1x1x32xf32> to vector<1x32xf32>
    %c1_92 = arith.constant 1 : index
    %c0_93 = arith.constant 0 : index
    %c0_94 = arith.constant 0 : index
    %200 = vector.load %arg9[%c1_92, %c0_93, %c0_94] : memref<2x1x32xf32, #tpu.memory_space<vmem>>, vector<1x1x32xf32>
    %201 = vector.shape_cast %200 : vector<1x1x32xf32> to vector<1x32xf32>
    %cst_95 = arith.constant dense<0.000000e+00> : vector<8xf32>
    %202 = vector.multi_reduction <add>, %197, %cst_95 [1] : vector<8x32xf32> to vector<8xf32>
    %203 = vector.shape_cast %202 : vector<8xf32> to vector<8x1xf32>
    %cst_96 = arith.constant 3.200000e+01 : f32
    %204 = vector.broadcast %cst_96 : f32 to vector<8x1xf32>
    %205 = arith.divf %203, %204 : vector<8x1xf32>
    %206 = vector.broadcast %205 : vector<8x1xf32> to vector<8x32xf32>
    %207 = arith.subf %197, %206 : vector<8x32xf32>
    %208 = arith.mulf %207, %207 : vector<8x32xf32>
    %cst_97 = arith.constant dense<0.000000e+00> : vector<8xf32>
    %209 = vector.multi_reduction <add>, %208, %cst_97 [1] : vector<8x32xf32> to vector<8xf32>
    %210 = vector.shape_cast %209 : vector<8xf32> to vector<8x1xf32>
    %cst_98 = arith.constant 3.200000e+01 : f32
    %211 = vector.broadcast %cst_98 : f32 to vector<8x1xf32>
    %212 = arith.divf %210, %211 : vector<8x1xf32>
    %cst_99 = arith.constant 9.99999997E-7 : f32
    %213 = vector.broadcast %cst_99 : f32 to vector<8x1xf32>
    %214 = arith.addf %212, %213 : vector<8x1xf32>
    %215 = math.rsqrt %214 : vector<8x1xf32>
    %216 = vector.broadcast %205 : vector<8x1xf32> to vector<8x32xf32>
    %217 = arith.subf %197, %216 : vector<8x32xf32>
    %218 = vector.broadcast %215 : vector<8x1xf32> to vector<8x32xf32>
    %219 = arith.mulf %217, %218 : vector<8x32xf32>
    %220 = vector.broadcast %199 : vector<1x32xf32> to vector<8x32xf32>
    %221 = arith.mulf %219, %220 : vector<8x32xf32>
    %222 = vector.broadcast %201 : vector<1x32xf32> to vector<8x32xf32>
    %223 = arith.addf %221, %222 : vector<8x32xf32>
    %224 = arith.truncf %223 : vector<8x32xf32> to vector<8x32xbf16>
    %c1_100 = arith.constant 1 : index
    %c0_101 = arith.constant 0 : index
    %c0_102 = arith.constant 0 : index
    %225 = vector.load %arg10[%c1_100, %c0_101, %c0_102] : memref<2x32x64xbf16, #tpu.memory_space<vmem>>, vector<1x32x64xbf16>
    %226 = vector.shape_cast %225 : vector<1x32x64xbf16> to vector<32x64xbf16>
    %cst_103 = arith.constant dense<0.000000e+00> : vector<8x64xf32>
    %227 = tpu.matmul %224, %226, %cst_103 {dimension_numbers = #tpu.dot_dimension_numbers<[1], [0], [0], [1], [0, 0, 1, 1], [], []>} : vector<8x32xbf16>, vector<32x64xbf16>, vector<8x64xf32> -> vector<8x64xf32>
    %c1_104 = arith.constant 1 : index
    %c0_105 = arith.constant 0 : index
    %c0_106 = arith.constant 0 : index
    %228 = vector.load %arg11[%c1_104, %c0_105, %c0_106] : memref<2x1x64xf32, #tpu.memory_space<vmem>>, vector<1x1x64xf32>
    %229 = vector.shape_cast %228 : vector<1x1x64xf32> to vector<1x64xf32>
    %230 = vector.broadcast %229 : vector<1x64xf32> to vector<8x64xf32>
    %231 = arith.addf %227, %230 : vector<8x64xf32>
    %cst_107 = arith.constant 5.000000e-01 : f32
    %232 = vector.broadcast %cst_107 : f32 to vector<8x64xf32>
    %233 = arith.mulf %232, %231 : vector<8x64xf32>
    %cst_108 = arith.constant 4.471500e-02 : f32
    %234 = vector.broadcast %cst_108 : f32 to vector<8x64xf32>
    %235 = arith.mulf %234, %231 : vector<8x64xf32>
    %236 = arith.mulf %235, %231 : vector<8x64xf32>
    %237 = arith.mulf %236, %231 : vector<8x64xf32>
    %238 = arith.addf %231, %237 : vector<8x64xf32>
    %cst_109 = arith.constant 0.797884583 : f32
    %239 = vector.broadcast %cst_109 : f32 to vector<8x64xf32>
    %240 = arith.mulf %239, %238 : vector<8x64xf32>
    %241 = math.tanh %240 : vector<8x64xf32>
    %cst_110 = arith.constant 1.000000e+00 : f32
    %242 = vector.broadcast %cst_110 : f32 to vector<8x64xf32>
    %243 = arith.addf %242, %241 : vector<8x64xf32>
    %244 = arith.mulf %233, %243 : vector<8x64xf32>
    %245 = arith.truncf %244 : vector<8x64xf32> to vector<8x64xbf16>
    %c1_111 = arith.constant 1 : index
    %c0_112 = arith.constant 0 : index
    %c0_113 = arith.constant 0 : index
    %246 = vector.load %arg12[%c1_111, %c0_112, %c0_113] : memref<2x64x32xbf16, #tpu.memory_space<vmem>>, vector<1x64x32xbf16>
    %247 = vector.shape_cast %246 : vector<1x64x32xbf16> to vector<64x32xbf16>
    %cst_114 = arith.constant dense<0.000000e+00> : vector<8x32xf32>
    %248 = tpu.matmul %245, %247, %cst_114 {dimension_numbers = #tpu.dot_dimension_numbers<[1], [0], [0], [1], [0, 0, 1, 1], [], []>} : vector<8x64xbf16>, vector<64x32xbf16>, vector<8x32xf32> -> vector<8x32xf32>
    %c1_115 = arith.constant 1 : index
    %c0_116 = arith.constant 0 : index
    %c0_117 = arith.constant 0 : index
    %249 = vector.load %arg13[%c1_115, %c0_116, %c0_117] : memref<2x1x32xf32, #tpu.memory_space<vmem>>, vector<1x1x32xf32>
    %250 = vector.shape_cast %249 : vector<1x1x32xf32> to vector<1x32xf32>
    %251 = vector.broadcast %250 : vector<1x32xf32> to vector<8x32xf32>
    %252 = arith.addf %248, %251 : vector<8x32xf32>
    %253 = arith.addf %197, %252 : vector<8x32xf32>
    %c0_118 = arith.constant 0 : index
    %c0_119 = arith.constant 0 : index
    %c0_120 = arith.constant 0 : index
    %254 = vector.load %arg14[%c0_118, %c0_119, %c0_120] : memref<1x8x32xf32, #tpu.memory_space<vmem>>, vector<1x8x32xf32>
    %255 = vector.shape_cast %254 : vector<1x8x32xf32> to vector<8x32xf32>
    %256 = vector.shape_cast %253 : vector<8x32xf32> to vector<1x8x32xf32>
    tpu.vector_store %arg14[%c0_118, %c0_119, %c0_120], %256 {strides = array<i32>} : memref<1x8x32xf32, #tpu.memory_space<vmem>>, vector<1x8x32xf32>,
    return
  }
  func.func @transform_0(%arg0: i32) -> (i32, i32, i32) {
    %c0_i32 = arith.constant 0 : i32
    %c0_i32_0 = arith.constant 0 : i32
    %c0_i32_1 = arith.constant 0 : i32
    return %arg0, %c0_i32, %c0_i32_0 : i32, i32, i32
  }
  func.func @transform_1(%arg0: i32) -> (i32, i32, i32) {
    %c0_i32 = arith.constant 0 : i32
    %c0_i32_0 = arith.constant 0 : i32
    %c0_i32_1 = arith.constant 0 : i32
    %c0_i32_2 = arith.constant 0 : i32
    return %c0_i32, %c0_i32_0, %c0_i32_1 : i32, i32, i32
  }
  func.func @transform_2(%arg0: i32) -> (i32, i32, i32) {
    %c0_i32 = arith.constant 0 : i32
    %c0_i32_0 = arith.constant 0 : i32
    %c0_i32_1 = arith.constant 0 : i32
    %c0_i32_2 = arith.constant 0 : i32
    return %c0_i32, %c0_i32_0, %c0_i32_1 : i32, i32, i32
  }
  func.func @transform_3(%arg0: i32) -> (i32, i32, i32) {
    %c0_i32 = arith.constant 0 : i32
    %c0_i32_0 = arith.constant 0 : i32
    %c0_i32_1 = arith.constant 0 : i32
    %c0_i32_2 = arith.constant 0 : i32
    return %c0_i32, %c0_i32_0, %c0_i32_1 : i32, i32, i32
  }
  func.func @transform_4(%arg0: i32) -> (i32, i32, i32) {
    %c0_i32 = arith.constant 0 : i32
    %c0_i32_0 = arith.constant 0 : i32
    %c0_i32_1 = arith.constant 0 : i32
    %c0_i32_2 = arith.constant 0 : i32
    return %c0_i32, %c0_i32_0, %c0_i32_1 : i32, i32, i32
  }
  func.func @transform_5(%arg0: i32) -> (i32, i32, i32) {
    %c0_i32 = arith.constant 0 : i32
    %c0_i32_0 = arith.constant 0 : i32
    %c0_i32_1 = arith.constant 0 : i32
    %c0_i32_2 = arith.constant 0 : i32
    return %c0_i32, %c0_i32_0, %c0_i32_1 : i32, i32, i32
  }
  func.func @transform_6(%arg0: i32) -> (i32, i32, i32) {
    %c0_i32 = arith.constant 0 : i32
    %c0_i32_0 = arith.constant 0 : i32
    %c0_i32_1 = arith.constant 0 : i32
    %c0_i32_2 = arith.constant 0 : i32
    return %c0_i32, %c0_i32_0, %c0_i32_1 : i32, i32, i32
  }
  func.func @transform_7(%arg0: i32) -> (i32, i32, i32) {
    %c0_i32 = arith.constant 0 : i32
    %c0_i32_0 = arith.constant 0 : i32
    %c0_i32_1 = arith.constant 0 : i32
    %c0_i32_2 = arith.constant 0 : i32
    return %c0_i32, %c0_i32_0, %c0_i32_1 : i32, i32, i32
  }
  func.func @transform_8(%arg0: i32) -> (i32, i32, i32) {
    %c0_i32 = arith.constant 0 : i32
    %c0_i32_0 = arith.constant 0 : i32
    %c0_i32_1 = arith.constant 0 : i32
    %c0_i32_2 = arith.constant 0 : i32
    return %c0_i32, %c0_i32_0, %c0_i32_1 : i32, i32, i32
  }
  func.func @transform_9(%arg0: i32) -> (i32, i32, i32) {
    %c0_i32 = arith.constant 0 : i32
    %c0_i32_0 = arith.constant 0 : i32
    %c0_i32_1 = arith.constant 0 : i32
    %c0_i32_2 = arith.constant 0 : i32
    return %c0_i32, %c0_i32_0, %c0_i32_1 : i32, i32, i32
  }
  func.func @transform_10(%arg0: i32) -> (i32, i32, i32) {
    %c0_i32 = arith.constant 0 : i32
    %c0_i32_0 = arith.constant 0 : i32
    %c0_i32_1 = arith.constant 0 : i32
    %c0_i32_2 = arith.constant 0 : i32
    return %c0_i32, %c0_i32_0, %c0_i32_1 : i32, i32, i32
  }
  func.func @transform_11(%arg0: i32) -> (i32, i32, i32) {
    %c0_i32 = arith.constant 0 : i32
    %c0_i32_0 = arith.constant 0 : i32
    %c0_i32_1 = arith.constant 0 : i32
    %c0_i32_2 = arith.constant 0 : i32
    return %c0_i32, %c0_i32_0, %c0_i32_1 : i32, i32, i32
  }
  func.func @transform_12(%arg0: i32) -> (i32, i32, i32) {
    %c0_i32 = arith.constant 0 : i32
    %c0_i32_0 = arith.constant 0 : i32
    %c0_i32_1 = arith.constant 0 : i32
    %c0_i32_2 = arith.constant 0 : i32
    return %c0_i32, %c0_i32_0, %c0_i32_1 : i32, i32, i32
  }
  func.func @transform_13(%arg0: i32) -> (i32, i32, i32) {
    %c0_i32 = arith.constant 0 : i32
    %c0_i32_0 = arith.constant 0 : i32
    %c0_i32_1 = arith.constant 0 : i32
    return %arg0, %c0_i32, %c0_i32_0 : i32, i32, i32
  }
}

</mosaic_0001>

<llo_original>
// kernel: siglip_encoder.1
$region0: #{siglip_encoder.1}
  #allocation0 [shape = 'u32[]', space=smem, size = 0x4, offset = 0x4, fixed_abs, tag = 'smem constant byte address 0x4 - core index']
  #allocation1 [shape = 'u32[72,128]{1,0:T(1,128)}', space=vmem, size = 0x9000, scoped, tag = 'internal scratch']
  %s0 = inlined_call_operand.vmem [shape: f32[2,8,32], index: 0, kind: input, shape index: {}]
  %s1 = inlined_call_operand.vmem [shape: f32[2,1,32], index: 1, kind: input, shape index: {}]
  %s2 = inlined_call_operand.vmem [shape: f32[2,1,32], index: 2, kind: input, shape index: {}]
  %s3 = inlined_call_operand.vmem [shape: bf16[2,96,32], index: 3, kind: input, shape index: {}]
  %s4 = inlined_call_operand.vmem [shape: f32[2,96,1], index: 4, kind: input, shape index: {}]
  %s5 = inlined_call_operand.vmem [shape: bf16[2,32,32], index: 5, kind: input, shape index: {}]
  %s6 = inlined_call_operand.vmem [shape: f32[2,1,32], index: 6, kind: input, shape index: {}]
  %s7 = inlined_call_operand.vmem [shape: f32[2,1,32], index: 7, kind: input, shape index: {}]
  %s8 = inlined_call_operand.vmem [shape: f32[2,1,32], index: 8, kind: input, shape index: {}]
  %s9 = inlined_call_operand.vmem [shape: bf16[2,32,64], index: 9, kind: input, shape index: {}]
  %s10 = inlined_call_operand.vmem [shape: f32[2,1,64], index: 10, kind: input, shape index: {}]
  %s11 = inlined_call_operand.vmem [shape: bf16[2,64,32], index: 11, kind: input, shape index: {}]
  %s12 = inlined_call_operand.vmem [shape: f32[2,1,32], index: 12, kind: input, shape index: {}]
  %s13 = inlined_call_operand.hbm [shape: f32[2,8,32], index: 13, kind: output, shape index: {}]
  %s14 = sld [smem:[#allocation0]]
  $region85: #{siglip_encoder.1} parent=0
    _
  %s16 = ssub.s32 1, %s14
  %s17 = scalar_select 0, %s16, %s14
  $region1: #{siglip_encoder.1} parent=0
    #allocation2 [shape = 'u8[8192]{0}', space=vmem, size = 0x2000, scoped, tag = 'output window, operand 0']
    #allocation3 [shape = 's32[2]{0}', space=sflag, size = 0x8, scoped, tag = 'scoped memory for siglip_encoder.1']
    %18 = vsyncpa [#allocation3], 0
    %s19 = scalar_lea.sflag [#allocation3], 1
    %20 = vsyncpa %s19, 0
    loop: start=0, step=1, limit=4
    $region2: #{siglip_encoder.1} parent=1 // loop_pre_header
      _
    $region3: #{siglip_encoder.1} parent=1 // loop_header
      %s22 = sphi 0, %s26
      %p23 = scmp.ge.s32.totalorder %s22, 4
      %s32 = sphi 0, %s34
      %s35 = sphi 0, %s32
      %s36 = sphi 0, %s35
      %s52 = sphi 0, %s36
      %s56 = sphi 0, %s56
      %s58 = sphi 0, %s56
      %s59 = sphi 0, %s58
      %s73 = sphi 0, %s59
      %s77 = sphi 0, %s77
      %s79 = sphi 0, %s77
      %s80 = sphi 0, %s79
      %s94 = sphi 0, %s80
      %s98 = sphi 0, %s98
      %s100 = sphi 0, %s98
      %s101 = sphi 0, %s100
      %s115 = sphi 0, %s101
      %s119 = sphi 0, %s119
      %s121 = sphi 0, %s119
      %s122 = sphi 0, %s121
      %s136 = sphi 0, %s122
      %s140 = sphi 0, %s140
      %s142 = sphi 0, %s140
      %s143 = sphi 0, %s142
      %s157 = sphi 0, %s143
      %s161 = sphi 0, %s161
      %s163 = sphi 0, %s161
      %s164 = sphi 0, %s163
      %s178 = sphi 0, %s164
      %s182 = sphi 0, %s182
      %s184 = sphi 0, %s182
      %s185 = sphi 0, %s184
      %s199 = sphi 0, %s185
      %s203 = sphi 0, %s203
      %s205 = sphi 0, %s203
      %s206 = sphi 0, %s205
      %s220 = sphi 0, %s206
      %s224 = sphi 0, %s224
      %s226 = sphi 0, %s224
      %s227 = sphi 0, %s226
      %s241 = sphi 0, %s227
      %s245 = sphi 0, %s245
      %s247 = sphi 0, %s245
      %s248 = sphi 0, %s247
      %s262 = sphi 0, %s248
      %s266 = sphi 0, %s266
      %s268 = sphi 0, %s266
      %s269 = sphi 0, %s268
      %s283 = sphi 0, %s269
      %s287 = sphi 0, %s287
      %s289 = sphi 0, %s287
      %s290 = sphi 0, %s289
      %s304 = sphi 0, %s290
      %s310 = sphi 0, %s312
      %s313 = sphi 0, %s310
      %s314 = sphi 0, %s313
      %s330 = sphi 0, %s314
    $region4: #{siglip_encoder.1} parent=1 // loop_header_branch
      %25 = sbr.rel (%p23) target = $region8
    $region5: #{siglip_encoder.1} parent=1 // loop_body
      %s27 = ssub.s32 %s22, 1
      %s28 = ssub.s32 %s22, 2
      %s29 = sadd.s32 %s22, 1
      %s30 = ssub.s32 %s22, %s29
      %p31 = scmp.eq.s32.totalorder %s30, 0
      %s33 = sadd.s32 %s32, 1
      %s34 = scalar_select %p31, %s32, %s33
      %p37 = pneg %p31
      %p38 = scmp.eq.s32.totalorder %s22, 1
      %p39 = por %p37, %p38
      %p40 = scmp.ne.s32.totalorder %s32, %s35
      %p41 = scmp.eq.s32.totalorder %s22, 0
      %p42 = por %p40, %p41
      %p43 = scmp.ne.s32.totalorder %s32, %s35
      %p44 = scmp.eq.s32.totalorder %s27, 1
      %p45 = por %p43, %p44
      %p46 = scmp.ne.s32.totalorder %s35, %s36
      %p47 = scmp.eq.s32.totalorder %s27, 0
      %p48 = por %p46, %p47
      %p49 = scmp.ne.s32.totalorder %s35, %s36
      %p50 = scmp.eq.s32.totalorder %s28, 1
      %p51 = por %p49, %p50
      %p53 = scmp.ne.s32.totalorder %s36, %s52
      %p54 = scmp.eq.s32.totalorder %s28, 0
      %p55 = por %p53, %p54
      %s57 = sadd.s32 %s56, 1
      %p60 = scmp.eq.s32.totalorder %s22, 1
      %p61 = scmp.ne.s32.totalorder %s56, %s58
      %p62 = scmp.eq.s32.totalorder %s22, 0
      %p63 = por %p61, %p62
      %p64 = scmp.ne.s32.totalorder %s56, %s58
      %p65 = scmp.eq.s32.totalorder %s27, 1
      %p66 = por %p64, %p65
      %p67 = scmp.ne.s32.totalorder %s58, %s59
      %p68 = scmp.eq.s32.totalorder %s27, 0
      %p69 = por %p67, %p68
      %p70 = scmp.ne.s32.totalorder %s58, %s59
      %p71 = scmp.eq.s32.totalorder %s28, 1
      %p72 = por %p70, %p71
      %p74 = scmp.ne.s32.totalorder %s59, %s73
      %p75 = scmp.eq.s32.totalorder %s28, 0
      %p76 = por %p74, %p75
      %s78 = sadd.s32 %s77, 1
      %p81 = scmp.eq.s32.totalorder %s22, 1
      %p82 = scmp.ne.s32.totalorder %s77, %s79
      %p83 = scmp.eq.s32.totalorder %s22, 0
      %p84 = por %p82, %p83
      %p85 = scmp.ne.s32.totalorder %s77, %s79
      %p86 = scmp.eq.s32.totalorder %s27, 1
      %p87 = por %p85, %p86
      %p88 = scmp.ne.s32.totalorder %s79, %s80
      %p89 = scmp.eq.s32.totalorder %s27, 0
      %p90 = por %p88, %p89
      %p91 = scmp.ne.s32.totalorder %s79, %s80
      %p92 = scmp.eq.s32.totalorder %s28, 1
      %p93 = por %p91, %p92
      %p95 = scmp.ne.s32.totalorder %s80, %s94
      %p96 = scmp.eq.s32.totalorder %s28, 0
      %p97 = por %p95, %p96
      %s99 = sadd.s32 %s98, 1
      %p102 = scmp.eq.s32.totalorder %s22, 1
      %p103 = scmp.ne.s32.totalorder %s98, %s100
      %p104 = scmp.eq.s32.totalorder %s22, 0
      %p105 = por %p103, %p104
      %p106 = scmp.ne.s32.totalorder %s98, %s100
      %p107 = scmp.eq.s32.totalorder %s27, 1
      %p108 = por %p106, %p107
      %p109 = scmp.ne.s32.totalorder %s100, %s101
      %p110 = scmp.eq.s32.totalorder %s27, 0
      %p111 = por %p109, %p110
      %p112 = scmp.ne.s32.totalorder %s100, %s101
      %p113 = scmp.eq.s32.totalorder %s28, 1
      %p114 = por %p112, %p113
      %p116 = scmp.ne.s32.totalorder %s101, %s115
      %p117 = scmp.eq.s32.totalorder %s28, 0
      %p118 = por %p116, %p117
      %s120 = sadd.s32 %s119, 1
      %p123 = scmp.eq.s32.totalorder %s22, 1
      %p124 = scmp.ne.s32.totalorder %s119, %s121
      %p125 = scmp.eq.s32.totalorder %s22, 0
      %p126 = por %p124, %p125
      %p127 = scmp.ne.s32.totalorder %s119, %s121
      %p128 = scmp.eq.s32.totalorder %s27, 1
      %p129 = por %p127, %p128
      %p130 = scmp.ne.s32.totalorder %s121, %s122
      %p131 = scmp.eq.s32.totalorder %s27, 0
      %p132 = por %p130, %p131
      %p133 = scmp.ne.s32.totalorder %s121, %s122
      %p134 = scmp.eq.s32.totalorder %s28, 1
      %p135 = por %p133, %p134
      %p137 = scmp.ne.s32.totalorder %s122, %s136
      %p138 = scmp.eq.s32.totalorder %s28, 0
      %p139 = por %p137, %p138
      %s141 = sadd.s32 %s140, 1
      %p144 = scmp.eq.s32.totalorder %s22, 1
      %p145 = scmp.ne.s32.totalorder %s140, %s142
      %p146 = scmp.eq.s32.totalorder %s22, 0
      %p147 = por %p145, %p146
      %p148 = scmp.ne.s32.totalorder %s140, %s142
      %p149 = scmp.eq.s32.totalorder %s27, 1
      %p150 = por %p148, %p149
      %p151 = scmp.ne.s32.totalorder %s142, %s143
      %p152 = scmp.eq.s32.totalorder %s27, 0
      %p153 = por %p151, %p152
      %p154 = scmp.ne.s32.totalorder %s142, %s143
      %p155 = scmp.eq.s32.totalorder %s28, 1
      %p156 = por %p154, %p155
      %p158 = scmp.ne.s32.totalorder %s143, %s157
      %p159 = scmp.eq.s32.totalorder %s28, 0
      %p160 = por %p158, %p159
      %s162 = sadd.s32 %s161, 1
      %p165 = scmp.eq.s32.totalorder %s22, 1
      %p166 = scmp.ne.s32.totalorder %s161, %s163
      %p167 = scmp.eq.s32.totalorder %s22, 0
      %p168 = por %p166, %p167
      %p169 = scmp.ne.s32.totalorder %s161, %s163
      %p170 = scmp.eq.s32.totalorder %s27, 1
      %p171 = por %p169, %p170
      %p172 = scmp.ne.s32.totalorder %s163, %s164
      %p173 = scmp.eq.s32.totalorder %s27, 0
      %p174 = por %p172, %p173
      %p175 = scmp.ne.s32.totalorder %s163, %s164
      %p176 = scmp.eq.s32.totalorder %s28, 1
      %p177 = por %p175, %p176
      %p179 = scmp.ne.s32.totalorder %s164, %s178
      %p180 = scmp.eq.s32.totalorder %s28, 0
      %p181 = por %p179, %p180
      %s183 = sadd.s32 %s182, 1
      %p186 = scmp.eq.s32.totalorder %s22, 1
      %p187 = scmp.ne.s32.totalorder %s182, %s184
      %p188 = scmp.eq.s32.totalorder %s22, 0
      %p189 = por %p187, %p188
      %p190 = scmp.ne.s32.totalorder %s182, %s184
      %p191 = scmp.eq.s32.totalorder %s27, 1
      %p192 = por %p190, %p191
      %p193 = scmp.ne.s32.totalorder %s184, %s185
      %p194 = scmp.eq.s32.totalorder %s27, 0
      %p195 = por %p193, %p194
      %p196 = scmp.ne.s32.totalorder %s184, %s185
      %p197 = scmp.eq.s32.totalorder %s28, 1
      %p198 = por %p196, %p197
      %p200 = scmp.ne.s32.totalorder %s185, %s199
      %p201 = scmp.eq.s32.totalorder %s28, 0
      %p202 = por %p200, %p201
      %s204 = sadd.s32 %s203, 1
      %p207 = scmp.eq.s32.totalorder %s22, 1
      %p208 = scmp.ne.s32.totalorder %s203, %s205
      %p209 = scmp.eq.s32.totalorder %s22, 0
      %p210 = por %p208, %p209
      %p211 = scmp.ne.s32.totalorder %s203, %s205
      %p212 = scmp.eq.s32.totalorder %s27, 1
      %p213 = por %p211, %p212
      %p214 = scmp.ne.s32.totalorder %s205, %s206
      %p215 = scmp.eq.s32.totalorder %s27, 0
      %p216 = por %p214, %p215
      %p217 = scmp.ne.s32.totalorder %s205, %s206
      %p218 = scmp.eq.s32.totalorder %s28, 1
      %p219 = por %p217, %p218
      %p221 = scmp.ne.s32.totalorder %s206, %s220
      %p222 = scmp.eq.s32.totalorder %s28, 0
      %p223 = por %p221, %p222
      %s225 = sadd.s32 %s224, 1
      %p228 = scmp.eq.s32.totalorder %s22, 1
      %p229 = scmp.ne.s32.totalorder %s224, %s226
      %p230 = scmp.eq.s32.totalorder %s22, 0
      %p231 = por %p229, %p230
      %p232 = scmp.ne.s32.totalorder %s224, %s226
      %p233 = scmp.eq.s32.totalorder %s27, 1
      %p234 = por %p232, %p233
      %p235 = scmp.ne.s32.totalorder %s226, %s227
      %p236 = scmp.eq.s32.totalorder %s27, 0
      %p237 = por %p235, %p236
      %p238 = scmp.ne.s32.totalorder %s226, %s227
      %p239 = scmp.eq.s32.totalorder %s28, 1
      %p240 = por %p238, %p239
      %p242 = scmp.ne.s32.totalorder %s227, %s241
      %p243 = scmp.eq.s32.totalorder %s28, 0
      %p244 = por %p242, %p243
      %s246 = sadd.s32 %s245, 1
      %p249 = scmp.eq.s32.totalorder %s22, 1
      %p250 = scmp.ne.s32.totalorder %s245, %s247
      %p251 = scmp.eq.s32.totalorder %s22, 0
      %p252 = por %p250, %p251
      %p253 = scmp.ne.s32.totalorder %s245, %s247
      %p254 = scmp.eq.s32.totalorder %s27, 1
      %p255 = por %p253, %p254
      %p256 = scmp.ne.s32.totalorder %s247, %s248
      %p257 = scmp.eq.s32.totalorder %s27, 0
      %p258 = por %p256, %p257
      %p259 = scmp.ne.s32.totalorder %s247, %s248
      %p260 = scmp.eq.s32.totalorder %s28, 1
      %p261 = por %p259, %p260
      %p263 = scmp.ne.s32.totalorder %s248, %s262
      %p264 = scmp.eq.s32.totalorder %s28, 0
      %p265 = por %p263, %p264
      %s267 = sadd.s32 %s266, 1
      %p270 = scmp.eq.s32.totalorder %s22, 1
      %p271 = scmp.ne.s32.totalorder %s266, %s268
      %p272 = scmp.eq.s32.totalorder %s22, 0
      %p273 = por %p271, %p272
      %p274 = scmp.ne.s32.totalorder %s266, %s268
      %p275 = scmp.eq.s32.totalorder %s27, 1
      %p276 = por %p274, %p275
      %p277 = scmp.ne.s32.totalorder %s268, %s269
      %p278 = scmp.eq.s32.totalorder %s27, 0
      %p279 = por %p277, %p278
      %p280 = scmp.ne.s32.totalorder %s268, %s269
      %p281 = scmp.eq.s32.totalorder %s28, 1
      %p282 = por %p280, %p281
      %p284 = scmp.ne.s32.totalorder %s269, %s283
      %p285 = scmp.eq.s32.totalorder %s28, 0
      %p286 = por %p284, %p285
      %s288 = sadd.s32 %s287, 1
      %p291 = scmp.eq.s32.totalorder %s22, 1
      %p292 = scmp.ne.s32.totalorder %s287, %s289
      %p293 = scmp.eq.s32.totalorder %s22, 0
      %p294 = por %p292, %p293
      %p295 = scmp.ne.s32.totalorder %s287, %s289
      %p296 = scmp.eq.s32.totalorder %s27, 1
      %p297 = por %p295, %p296
      %p298 = scmp.ne.s32.totalorder %s289, %s290
      %p299 = scmp.eq.s32.totalorder %s27, 0
      %p300 = por %p298, %p299
      %p301 = scmp.ne.s32.totalorder %s289, %s290
      %p302 = scmp.eq.s32.totalorder %s28, 1
      %p303 = por %p301, %p302
      %p305 = scmp.ne.s32.totalorder %s290, %s304
      %p306 = scmp.eq.s32.totalorder %s28, 0
      %p307 = por %p305, %p306
      %s308 = ssub.s32 %s22, %s29
      %p309 = scmp.eq.s32.totalorder %s308, 0
      %s311 = sadd.s32 %s310, 1
      %s312 = scalar_select %p309, %s310, %s311
      %p315 = pneg %p309
      %p316 = scmp.eq.s32.totalorder %s22, 1
      %p317 = por %p315, %p316
      %p318 = scmp.ne.s32.totalorder %s310, %s313
      %p319 = scmp.eq.s32.totalorder %s22, 0
      %p320 = por %p318, %p319
      %p321 = scmp.ne.s32.totalorder %s310, %s313
      %p322 = scmp.eq.s32.totalorder %s27, 1
      %p323 = por %p321, %p322
      %p324 = scmp.ne.s32.totalorder %s313, %s314
      %p325 = scmp.eq.s32.totalorder %s27, 0
      %p326 = por %p324, %p325
      %p327 = scmp.ne.s32.totalorder %s313, %s314
      %p328 = scmp.eq.s32.totalorder %s28, 1
      %p329 = por %p327, %p328
      %p331 = scmp.ne.s32.totalorder %s314, %s330
      %p332 = scmp.eq.s32.totalorder %s28, 0
      %p333 = por %p331, %p332
      %p334 = scmp.le.s32.totalorder 1, %s22
      %p335 = scmp.lt.s32.totalorder %s22, 3
      %p336 = pnand %p334, %p335
      %p337 = pneg %p336
      // Predicated region
      $region9: #{siglip_encoder.1} parent=5 // pred_check
        _
      $region10: #{siglip_encoder.1} parent=5 // pred_check_branch
        %339 = sbr.rel (%p336) target = $region12
      $region11: #{siglip_encoder.1} parent=5 // pred_region
        %s340 = ssub.s32 %s22, 1
        // Predicated region
        $region13: #{siglip_encoder.1} parent=11 // pred_check
          %p341 = pneg %p69
        $region14: #{siglip_encoder.1} parent=11 // pred_check_branch
          %343 = sbr.rel (%p341) target = $region16
        $region15: #{siglip_encoder.1} parent=11 // pred_region
          _
        $region16: #{siglip_encoder.1} parent=11 // pred_fallthru
          _
        // Predicated region
        $region17: #{siglip_encoder.1} parent=11 // pred_check
          %p344 = pneg %p90
        $region18: #{siglip_encoder.1} parent=11 // pred_check_branch
          %346 = sbr.rel (%p344) target = $region20
        $region19: #{siglip_encoder.1} parent=11 // pred_region
          _
        $region20: #{siglip_encoder.1} parent=11 // pred_fallthru
          _
        // Predicated region
        $region21: #{siglip_encoder.1} parent=11 // pred_check
          %p347 = pneg %p111
        $region22: #{siglip_encoder.1} parent=11 // pred_check_branch
          %349 = sbr.rel (%p347) target = $region24
        $region23: #{siglip_encoder.1} parent=11 // pred_region
          _
        $region24: #{siglip_encoder.1} parent=11 // pred_fallthru
          _
        // Predicated region
        $region25: #{siglip_encoder.1} parent=11 // pred_check
          %p350 = pneg %p132
        $region26: #{siglip_encoder.1} parent=11 // pred_check_branch
          %352 = sbr.rel (%p350) target = $region28
        $region27: #{siglip_encoder.1} parent=11 // pred_region
          _
        $region28: #{siglip_encoder.1} parent=11 // pred_fallthru
          _
        // Predicated region
        $region29: #{siglip_encoder.1} parent=11 // pred_check
          %p353 = pneg %p153
        $region30: #{siglip_encoder.1} parent=11 // pred_check_branch
          %355 = sbr.rel (%p353) target = $region32
        $region31: #{siglip_encoder.1} parent=11 // pred_region
          _
        $region32: #{siglip_encoder.1} parent=11 // pred_fallthru
          _
        // Predicated region
        $region33: #{siglip_encoder.1} parent=11 // pred_check
          %p356 = pneg %p174
        $region34: #{siglip_encoder.1} parent=11 // pred_check_branch
          %358 = sbr.rel (%p356) target = $region36
        $region35: #{siglip_encoder.1} parent=11 // pred_region
          _
        $region36: #{siglip_encoder.1} parent=11 // pred_fallthru
          _
        // Predicated region
        $region37: #{siglip_encoder.1} parent=11 // pred_check
          %p359 = pneg %p195
        $region38: #{siglip_encoder.1} parent=11 // pred_check_branch
          %361 = sbr.rel (%p359) target = $region40
        $region39: #{siglip_encoder.1} parent=11 // pred_region
          _
        $region40: #{siglip_encoder.1} parent=11 // pred_fallthru
          _
        // Predicated region
        $region41: #{siglip_encoder.1} parent=11 // pred_check
          %p362 = pneg %p216
        $region42: #{siglip_encoder.1} parent=11 // pred_check_branch
          %364 = sbr.rel (%p362) target = $region44
        $region43: #{siglip_encoder.1} parent=11 // pred_region
          _
        $region44: #{siglip_encoder.1} parent=11 // pred_fallthru
          _
        // Predicated region
        $region45: #{siglip_encoder.1} parent=11 // pred_check
          %p365 = pneg %p237
        $region46: #{siglip_encoder.1} parent=11 // pred_check_branch
          %367 = sbr.rel (%p365) target = $region48
        $region47: #{siglip_encoder.1} parent=11 // pred_region
          _
        $region48: #{siglip_encoder.1} parent=11 // pred_fallthru
          _
        // Predicated region
        $region49: #{siglip_encoder.1} parent=11 // pred_check
          %p368 = pneg %p258
        $region50: #{siglip_encoder.1} parent=11 // pred_check_branch
          %370 = sbr.rel (%p368) target = $region52
        $region51: #{siglip_encoder.1} parent=11 // pred_region
          _
        $region52: #{siglip_encoder.1} parent=11 // pred_fallthru
          _
        // Predicated region
        $region53: #{siglip_encoder.1} parent=11 // pred_check
          %p371 = pneg %p279
        $region54: #{siglip_encoder.1} parent=11 // pred_check_branch
          %373 = sbr.rel (%p371) target = $region56
        $region55: #{siglip_encoder.1} parent=11 // pred_region
          _
        $region56: #{siglip_encoder.1} parent=11 // pred_fallthru
          _
        // Predicated region
        $region57: #{siglip_encoder.1} parent=11 // pred_check
          %p374 = pneg %p300
        $region58: #{siglip_encoder.1} parent=11 // pred_check_branch
          %376 = sbr.rel (%p374) target = $region60
        $region59: #{siglip_encoder.1} parent=11 // pred_region
          _
        $region60: #{siglip_encoder.1} parent=11 // pred_fallthru
          _
      $region12: #{siglip_encoder.1} parent=5 // pred_fallthru
        _
      %p377 = scmp.lt.s32.totalorder %s22, 2
      // Predicated region
      $region61: #{siglip_encoder.1} parent=5 // pred_check
        %p378 = pneg %p377
      $region62: #{siglip_encoder.1} parent=5 // pred_check_branch
        %380 = sbr.rel (%p378) target = $region64
      $region63: #{siglip_encoder.1} parent=5 // pred_region
        // Predicated region
        $region65: #{siglip_encoder.1} parent=63 // pred_check
          %p381 = pneg %p42
        $region66: #{siglip_encoder.1} parent=63 // pred_check_branch
          %383 = sbr.rel (%p381) target = $region68
        $region67: #{siglip_encoder.1} parent=63 // pred_region
          %p384 = scmp.lt.s32.totalorder %s22, 1
          %s385 = scalar_select %p384, %s22, 1
          %s386 = smul.addr %s385, 8
          %s387 = scalar_lea.vmem %s0, %s386
        $region68: #{siglip_encoder.1} parent=63 // pred_fallthru
          _
      $region64: #{siglip_encoder.1} parent=5 // pred_fallthru
        _
      %p388 = scmp.le.s32.totalorder 1, %s22
      %p389 = scmp.lt.s32.totalorder %s22, 3
      %p390 = pnand %p388, %p389
      %p391 = pneg %p390
      // Predicated region
      $region69: #{siglip_encoder.1} parent=5 // pred_check
        _
      $region70: #{siglip_encoder.1} parent=5 // pred_check_branch
        %393 = sbr.rel (%p390) target = $region72
      $region71: #{siglip_encoder.1} parent=5 // pred_region
        %s394 = ssub.s32 %s22, 1
        %p395 = scmp.lt.s32.totalorder %s27, 1
        %s396 = scalar_select %p395, %s27, 1
        %s397 = smul.addr %s396, 8
        %s398 = scalar_lea.vmem %s0, %s397
        %p399 = pneg %p48
        %p400 = pneg %p45
        %p401 = pneg %p69
        %p402 = pneg %p66
        %p403 = pneg %p90
        %p404 = pneg %p87
        %p405 = pneg %p111
        %p406 = pneg %p108
        %p407 = pneg %p132
        %p408 = pneg %p129
        %p409 = pneg %p153
        %p410 = pneg %p150
        %p411 = pneg %p174
        %p412 = pneg %p171
        %p413 = pneg %p195
        %p414 = pneg %p192
        %p415 = pneg %p216
        %p416 = pneg %p213
        %p417 = pneg %p237
        %p418 = pneg %p234
        %p419 = pneg %p258
        %p420 = pneg %p255
        %p421 = pneg %p279
        %p422 = pneg %p276
        %p423 = pneg %p300
        %p424 = pneg %p297
        %p425 = pneg %p326
        %p426 = pneg %p323
        %s427 = sand.u32 %s313, 1
        %s428 = scalar_lea.sflag [#allocation3], %s427
        %s429 = sand.u32 %s313, 1
        %s430 = smul.addr %s429, 8
        %s431 = scalar_lea.vmem [#allocation2], %s430
        %p432 = scmp.lt.s32.totalorder %s27, 1
        %s433 = scalar_select %p432, %s27, 1
        %s434 = smul.addr %s433, 8
        %s435 = scalar_lea.vmem %s0, %s434
        %v437 = vld [vmem:[%s435] sm:$0xff]
        %v438 = vld [vmem:[%s1] sm:$0x1]
        %v439 = vld [vmem:[%s2] sm:$0x1]
        %vm440 = vcmask 261120
        %v441 = vsel %vm440, %v437, 0.0
        %442 = vadd.xlane.f32.xlu0 %v441
        %v443 = vpop.xlane.xlu0 %442
        %v444 = vrcp.pop 32.0
        %v445 = vmul.f32 32.0, %v444
        %v446 = vsub.f32 1.0, %v445
        %v447 = vmul.f32 %v444, %v446
        %v448 = vadd.f32 %v444, %v447
        %vm449 = vweird.f32 %v444
        %v450 = vsel %vm449, %v444, %v448
        %v451 = vmul.f32 %v443, %v450
        %v452 = vsub.f32 %v437, %v451
        %v453 = vmul.f32 %v452, %v452
        %v454 = vsel %vm440, %v453, 0.0
        %455 = vadd.xlane.f32.xlu0 %v454
        %v456 = vpop.xlane.xlu0 %455
        %v457 = vmul.f32 %v456, %v450
        %v458 = vadd.f32 %v457, 1e-06
        %v459 = vrsqrt.pop %v458
        %v460 = vmul.f32 %v459, %v458
        %v461 = vmul.f32 %v460, %v459
        %v462 = vmul.f32 0.5, %v461
        %v463 = vsub.f32 1.5, %v462
        %v464 = vmul.f32 %v459, %v463
        %vm465 = vweird.f32 %v458
        %vm466 = vweird.f32 %v459
        %vm467 = vmor %vm465, %vm466
        %v468 = vsel %vm467, %v459, %v464
        %v469 = vmul.f32 %v452, %v468
        %v471 = vperm.slane %v438, 0
        %v473 = vmul.f32 %v469, %v471
        %v475 = vperm.slane %v439, 0
        %v477 = vadd.f32 %v473, %v475
        %478 = vxpose.xlu0.b32.start [1/16] %v477, 128
        %479 = vxpose.xlu0.b32.cont [2/16] 0.0, 128
        %480 = vxpose.xlu0.b32.cont [3/16] 0.0, 128
        %481 = vxpose.xlu0.b32.cont [4/16] 0.0, 128
        %482 = vxpose.xlu0.b32.cont [5/16] 0.0, 128
        %483 = vxpose.xlu0.b32.cont [6/16] 0.0, 128
        %484 = vxpose.xlu0.b32.cont [7/16] 0.0, 128
        %485 = vxpose.xlu0.b32.cont [8/16] 0.0, 128
        %486 = vxpose.xlu0.b32.cont [9/16] 0.0, 128
        %487 = vxpose.xlu0.b32.cont [10/16] 0.0, 128
        %488 = vxpose.xlu0.b32.cont [11/16] 0.0, 128
        %489 = vxpose.xlu0.b32.cont [12/16] 0.0, 128
        %490 = vxpose.xlu0.b32.cont [13/16] 0.0, 128
        %491 = vxpose.xlu0.b32.cont [14/16] 0.0, 128
        %492 = vxpose.xlu0.b32.cont [15/16] 0.0, 128
        %493 = vxpose.xlu0.b32.end [16/16] 0.0, 128
        %v494 = vpop.trf.xlu0
        %v495 = vpop.trf.xlu0
        %v496 = vpop.trf.xlu0
        %v497 = vpop.trf.xlu0
        %v498 = vpop.trf.xlu0
        %v499 = vpop.trf.xlu0
        %v500 = vpop.trf.xlu0
        %v501 = vpop.trf.xlu0
        %v502 = vpop.trf.xlu0
        %v503 = vpop.trf.xlu0
        %v504 = vpop.trf.xlu0
        %v505 = vpop.trf.xlu0
        %v506 = vpop.trf.xlu0
        %v507 = vpop.trf.xlu0
        %v508 = vpop.trf.xlu0
        %v509 = vpop.trf.xlu0
        %v510 = vld [vmem:[%s3] sm:$0xf]
        %v511 = vld [vmem:[%s3 + $0x4] sm:$0xf]
        %v512 = vld [vmem:[%s3 + $0x8] sm:$0xf]
        %v513 = vld [vmem:[%s3 + $0xc] sm:$0xf]
        %v514 = vld [vmem:[%s3 + $0x10] sm:$0xf]
        %v515 = vld [vmem:[%s3 + $0x14] sm:$0xf]
        %v516 = vld [vmem:[%s3 + $0x18] sm:$0xf]
        %v517 = vld [vmem:[%s3 + $0x1c] sm:$0xf]
        %v518 = vld [vmem:[%s3 + $0x20] sm:$0xf]
        %v519 = vld [vmem:[%s3 + $0x24] sm:$0xf]
        %v520 = vld [vmem:[%s3 + $0x28] sm:$0xf]
        %v521 = vld [vmem:[%s3 + $0x2c] sm:$0xf]
        %v522 = vpack.c.bf16 %v495, %v494
        %v523 = vpack.c.bf16 %v497, %v496
        %v524 = vld [vmem:[%s4] sm:$0xff]
        %v525 = vld [vmem:[%s4 + $0x8] sm:$0xff]
        %v526 = vld [vmem:[%s4 + $0x10] sm:$0xff]
        %v527 = vld [vmem:[%s4 + $0x18] sm:$0xff]
        %v528 = vld [vmem:[%s4 + $0x20] sm:$0xff]
        %v529 = vld [vmem:[%s4 + $0x28] sm:$0xff]
        %v530 = vld [vmem:[%s4 + $0x30] sm:$0xff]
        %v531 = vld [vmem:[%s4 + $0x38] sm:$0xff]
        %v532 = vld [vmem:[%s4 + $0x40] sm:$0xff]
        %v533 = vld [vmem:[%s4 + $0x48] sm:$0xff]
        %v534 = vld [vmem:[%s4 + $0x50] sm:$0xff]
        %v535 = vld [vmem:[%s4 + $0x58] sm:$0xff]
        %537 = vset.pattern.permute.xlu0 0
        %538 = vperm.xlu0 %537, %v524
        %v539 = vpop.permute.xlu0 %538
        %542 = vset.pattern.permute.xlu0 0
        %543 = vperm.xlu0 %542, %v525
        %v544 = vpop.permute.xlu0 %543
        %547 = vset.pattern.permute.xlu0 0
        %548 = vperm.xlu0 %547, %v526
        %v549 = vpop.permute.xlu0 %548
        %552 = vset.pattern.permute.xlu0 0
        %553 = vperm.xlu0 %552, %v527
        %v554 = vpop.permute.xlu0 %553
        %557 = vset.pattern.permute.xlu0 0
        %558 = vperm.xlu0 %557, %v528
        %v559 = vpop.permute.xlu0 %558
        %562 = vset.pattern.permute.xlu0 0
        %563 = vperm.xlu0 %562, %v529
        %v564 = vpop.permute.xlu0 %563
        %567 = vset.pattern.permute.xlu0 0
        %568 = vperm.xlu0 %567, %v530
        %v569 = vpop.permute.xlu0 %568
        %572 = vset.pattern.permute.xlu0 0
        %573 = vperm.xlu0 %572, %v531
        %v574 = vpop.permute.xlu0 %573
        %577 = vset.pattern.permute.xlu0 0
        %578 = vperm.xlu0 %577, %v532
        %v579 = vpop.permute.xlu0 %578
        %582 = vset.pattern.permute.xlu0 0
        %583 = vperm.xlu0 %582, %v533
        %v584 = vpop.permute.xlu0 %583
        %587 = vset.pattern.permute.xlu0 0
        %588 = vperm.xlu0 %587, %v534
        %v589 = vpop.permute.xlu0 %588
        %592 = vset.pattern.permute.xlu0 0
        %593 = vperm.xlu0 %592, %v535
        %v594 = vpop.permute.xlu0 %593
        %v608 = vunpack.c.l.b16 %v510
        %v609 = vunpack.c.l.b16 %v511
        %v610 = vunpack.c.l.b16 %v512
        %v611 = vunpack.c.l.b16 %v513
        %v612 = vunpack.c.l.b16 %v514
        %v613 = vunpack.c.l.b16 %v515
        %v614 = vunpack.c.l.b16 %v516
        %v615 = vunpack.c.l.b16 %v517
        %v616 = vunpack.c.l.b16 %v518
        %v617 = vunpack.c.l.b16 %v519
        %v618 = vunpack.c.l.b16 %v520
        %v619 = vunpack.c.l.b16 %v521
        %v620 = vpack.c.b16 %v609, %v608
        %v621 = vpack.c.b16 %v611, %v610
        %v622 = vpack.c.b16 %v613, %v612
        %v623 = vpack.c.b16 %v615, %v614
        %v624 = vpack.c.b16 %v617, %v616
        %v625 = vpack.c.b16 %v619, %v618
        %v627 = vsel %vm440, %v620, 0
        %v630 = vsel %vm440, %v621, 0
        %v633 = vsel %vm440, %v622, 0
        %v636 = vsel %vm440, %v623, 0
        %v639 = vsel %vm440, %v624, 0
        %v642 = vsel %vm440, %v625, 0
        %644 = vmatpush.bf16.msra.mxu0 0
        %645 = vmatpush.bf16.msra.mxu0 0
        %646 = vmatpush.bf16.msra.mxu0 0
        %647 = vmatpush.bf16.msra.mxu0 0
        %648 = vmatpush.bf16.msra.mxu0 0
        %649 = vmatpush.bf16.msra.mxu0 0
        %650 = vmatpush.bf16.msra.mxu0 %v523
        %651 = vmatpush.bf16.msra.mxu0 %v522
        %652 = vmatmul.bf16.gmra.mxu0 %v627
        %v653 = vpop.f32.mrf.mxu0
        %v654 = vadd.f32 %v539, %v653
        %v655 = vpop.f32.mrf.mxu0
        %v656 = vadd.f32 %v544, %v655
        %657 = vmatmul.bf16.gmra.mxu0 %v630
        %v658 = vpop.f32.mrf.mxu0
        %v659 = vadd.f32 %v549, %v658
        %v660 = vpop.f32.mrf.mxu0
        %v661 = vadd.f32 %v554, %v660
        %662 = vmatmul.bf16.gmra.mxu0 %v633
        %v663 = vpop.f32.mrf.mxu0
        %v664 = vadd.f32 %v559, %v663
        %v665 = vpop.f32.mrf.mxu0
        %v666 = vadd.f32 %v564, %v665
        %667 = vmatmul.bf16.gmra.mxu0 %v636
        %v668 = vpop.f32.mrf.mxu0
        %v669 = vadd.f32 %v569, %v668
        %v670 = vpop.f32.mrf.mxu0
        %v671 = vadd.f32 %v574, %v670
        %672 = vmatmul.bf16.gmra.mxu0 %v639
        %v673 = vpop.f32.mrf.mxu0
        %v674 = vadd.f32 %v579, %v673
        %v675 = vpop.f32.mrf.mxu0
        %v676 = vadd.f32 %v584, %v675
        %677 = vmatmul.bf16.gmra.mxu0 %v642
        %v678 = vpop.f32.mrf.mxu0
        %v679 = vadd.f32 %v589, %v678
        %v680 = vpop.f32.mrf.mxu0
        %v681 = vadd.f32 %v594, %v680
        %682 = vdwg.mxu0
        %v683 = vpack.c.bf16 %v654, %v654
        %v684 = vpack.c.bf16 %v656, %v656
        %v685 = vpack.c.bf16 %v659, %v659
        %v686 = vpack.c.bf16 %v661, %v661
        %v687 = vpack.c.bf16 %v664, %v664
        %v688 = vpack.c.bf16 %v666, %v666
        %v689 = vpack.c.bf16 %v669, %v669
        %v690 = vpack.c.bf16 %v671, %v671
        %691 = vxpose.xlu0.c.b16.start [1/8] %v683, 128
        %692 = vxpose.xlu0.c.b16.cont [2/8] 0, 128
        %693 = vxpose.xlu0.c.b16.cont [3/8] 0, 128
        %694 = vxpose.xlu0.c.b16.cont [4/8] 0, 128
        %695 = vxpose.xlu0.c.b16.cont [5/8] 0, 128
        %696 = vxpose.xlu0.c.b16.cont [6/8] 0, 128
        %697 = vxpose.xlu0.c.b16.cont [7/8] 0, 128
        %698 = vxpose.xlu0.c.b16.end [8/8] 0, 128
        %v699 = vpop.trf.xlu0
        %v700 = vpop.trf.xlu0
        %v701 = vpop.trf.xlu0
        %v702 = vpop.trf.xlu0
        %v703 = vpop.trf.xlu0
        %v704 = vpop.trf.xlu0
        %v705 = vpop.trf.xlu0
        %v706 = vpop.trf.xlu0
        %vm707 = vcmask 64512
        %v709 = vsel %vm707, %v699, 0
        %vm711 = vcmask 1043456
        %v713 = vsel %vm711, %v687, 0
        %715 = vmatpush.bf16.msra.mxu0 0
        %716 = vmatpush.bf16.msra.mxu0 0
        %717 = vmatpush.bf16.msra.mxu0 0
        %718 = vmatpush.bf16.msra.mxu0 0
        %719 = vmatpush.bf16.msra.mxu0 0
        %720 = vmatpush.bf16.msra.mxu0 0
        %721 = vmatpush.bf16.msra.mxu0 0
        %722 = vmatpush.bf16.msra.mxu0 %v713
        %723 = vmatmul.bf16.gmra.mxu0 %v709
        %v724 = vpop.f32.mrf.mxu0
        %v725 = vadd.f32 0.0, %v724
        %v726 = vpop.f32.mrf.mxu0
        %727 = vdwg.mxu0
        %728 = vxpose.xlu0.c.b16.start [1/8] %v684, 128
        %729 = vxpose.xlu0.c.b16.cont [2/8] 0, 128
        %730 = vxpose.xlu0.c.b16.cont [3/8] 0, 128
        %731 = vxpose.xlu0.c.b16.cont [4/8] 0, 128
        %732 = vxpose.xlu0.c.b16.cont [5/8] 0, 128
        %733 = vxpose.xlu0.c.b16.cont [6/8] 0, 128
        %734 = vxpose.xlu0.c.b16.cont [7/8] 0, 128
        %735 = vxpose.xlu0.c.b16.end [8/8] 0, 128
        %v736 = vpop.trf.xlu0
        %v737 = vpop.trf.xlu0
        %v738 = vpop.trf.xlu0
        %v739 = vpop.trf.xlu0
        %v740 = vpop.trf.xlu0
        %v741 = vpop.trf.xlu0
        %v742 = vpop.trf.xlu0
        %v743 = vpop.trf.xlu0
        %v745 = vsel %vm707, %v736, 0
        %v748 = vsel %vm711, %v688, 0
        %750 = vmatpush.bf16.msra.mxu0 0
        %751 = vmatpush.bf16.msra.mxu0 0
        %752 = vmatpush.bf16.msra.mxu0 0
        %753 = vmatpush.bf16.msra.mxu0 0
        %754 = vmatpush.bf16.msra.mxu0 0
        %755 = vmatpush.bf16.msra.mxu0 0
        %756 = vmatpush.bf16.msra.mxu0 0
        %757 = vmatpush.bf16.msra.mxu0 %v748
        %758 = vmatmul.bf16.gmra.mxu0 %v745
        %v759 = vpop.f32.mrf.mxu0
        %v760 = vadd.f32 0.0, %v759
        %v761 = vpop.f32.mrf.mxu0
        %762 = vdwg.mxu0
        %763 = vxpose.xlu0.c.b16.start [1/8] %v685, 128
        %764 = vxpose.xlu0.c.b16.cont [2/8] 0, 128
        %765 = vxpose.xlu0.c.b16.cont [3/8] 0, 128
        %766 = vxpose.xlu0.c.b16.cont [4/8] 0, 128
        %767 = vxpose.xlu0.c.b16.cont [5/8] 0, 128
        %768 = vxpose.xlu0.c.b16.cont [6/8] 0, 128
        %769 = vxpose.xlu0.c.b16.cont [7/8] 0, 128
        %770 = vxpose.xlu0.c.b16.end [8/8] 0, 128
        %v771 = vpop.trf.xlu0
        %v772 = vpop.trf.xlu0
        %v773 = vpop.trf.xlu0
        %v774 = vpop.trf.xlu0
        %v775 = vpop.trf.xlu0
        %v776 = vpop.trf.xlu0
        %v777 = vpop.trf.xlu0
        %v778 = vpop.trf.xlu0
        %v780 = vsel %vm707, %v771, 0
        %v783 = vsel %vm711, %v689, 0
        %785 = vmatpush.bf16.msra.mxu0 0
        %786 = vmatpush.bf16.msra.mxu0 0
        %787 = vmatpush.bf16.msra.mxu0 0
        %788 = vmatpush.bf16.msra.mxu0 0
        %789 = vmatpush.bf16.msra.mxu0 0
        %790 = vmatpush.bf16.msra.mxu0 0
        %791 = vmatpush.bf16.msra.mxu0 0
        %792 = vmatpush.bf16.msra.mxu0 %v783
        %793 = vmatmul.bf16.gmra.mxu0 %v780
        %v794 = vpop.f32.mrf.mxu0
        %v795 = vadd.f32 0.0, %v794
        %v796 = vpop.f32.mrf.mxu0
        %797 = vdwg.mxu0
        %798 = vxpose.xlu0.c.b16.start [1/8] %v686, 128
        %799 = vxpose.xlu0.c.b16.cont [2/8] 0, 128
        %800 = vxpose.xlu0.c.b16.cont [3/8] 0, 128
        %801 = vxpose.xlu0.c.b16.cont [4/8] 0, 128
        %802 = vxpose.xlu0.c.b16.cont [5/8] 0, 128
        %803 = vxpose.xlu0.c.b16.cont [6/8] 0, 128
        %804 = vxpose.xlu0.c.b16.cont [7/8] 0, 128
        %805 = vxpose.xlu0.c.b16.end [8/8] 0, 128
        %v806 = vpop.trf.xlu0
        %v807 = vpop.trf.xlu0
        %v808 = vpop.trf.xlu0
        %v809 = vpop.trf.xlu0
        %v810 = vpop.trf.xlu0
        %v811 = vpop.trf.xlu0
        %v812 = vpop.trf.xlu0
        %v813 = vpop.trf.xlu0
        %v815 = vsel %vm707, %v806, 0
        %v818 = vsel %vm711, %v690, 0
        %820 = vmatpush.bf16.msra.mxu0 0
        %821 = vmatpush.bf16.msra.mxu0 0
        %822 = vmatpush.bf16.msra.mxu0 0
        %823 = vmatpush.bf16.msra.mxu0 0
        %824 = vmatpush.bf16.msra.mxu0 0
        %825 = vmatpush.bf16.msra.mxu0 0
        %826 = vmatpush.bf16.msra.mxu0 0
        %827 = vmatpush.bf16.msra.mxu0 %v818
        %828 = vmatmul.bf16.gmra.mxu0 %v815
        %v829 = vpop.f32.mrf.mxu0
        %v830 = vadd.f32 0.0, %v829
        %v831 = vpop.f32.mrf.mxu0
        %832 = vdwg.mxu0
        %v833 = vmul.f32 %v725, 0.35355338
        %v834 = vmul.f32 %v760, 0.35355338
        %v835 = vmul.f32 %v795, 0.35355338
        %v836 = vmul.f32 %v830, 0.35355338
        %v837 = vsel %vm707, %v833, -inf
        %838 = vmax.xlane.f32.xlu0 %v837
        %v839 = vpop.xlane.xlu0 %838
        %v840 = vsel %vm707, %v834, -inf
        %841 = vmax.xlane.f32.xlu0 %v840
        %v842 = vpop.xlane.xlu0 %841
        %v843 = vsel %vm707, %v835, -inf
        %844 = vmax.xlane.f32.xlu0 %v843
        %v845 = vpop.xlane.xlu0 %844
        %v846 = vsel %vm707, %v836, -inf
        %847 = vmax.xlane.f32.xlu0 %v846
        %v848 = vpop.xlane.xlu0 %847
        %v849 = vsub.f32 %v833, %v839
        %v850 = vsub.f32 %v834, %v842
        %v851 = vsub.f32 %v835, %v845
        %v852 = vsub.f32 %v836, %v848
        %v853 = vmul.f32 %v849, 1.442695
        %v854 = vpow.pop %v853
        %v855 = vmul.f32 %v850, 1.442695
        %v856 = vpow.pop %v855
        %v857 = vmul.f32 %v851, 1.442695
        %v858 = vpow.pop %v857
        %v859 = vmul.f32 %v852, 1.442695
        %v860 = vpow.pop %v859
        %v861 = vsel %vm707, %v854, 0.0
        %862 = vadd.xlane.f32.xlu0 %v861
        %v863 = vpop.xlane.xlu0 %862
        %v864 = vsel %vm707, %v856, 0.0
        %865 = vadd.xlane.f32.xlu0 %v864
        %v866 = vpop.xlane.xlu0 %865
        %v867 = vsel %vm707, %v858, 0.0
        %868 = vadd.xlane.f32.xlu0 %v867
        %v869 = vpop.xlane.xlu0 %868
        %v870 = vsel %vm707, %v860, 0.0
        %871 = vadd.xlane.f32.xlu0 %v870
        %v872 = vpop.xlane.xlu0 %871
        %v873 = vrcp.pop %v863
        %v874 = vrcp.pop %v866
        %v875 = vrcp.pop %v869
        %v876 = vrcp.pop %v872
        %v877 = vmul.f32 %v854, %v873
        %v878 = vmul.f32 %v856, %v874
        %v879 = vmul.f32 %v858, %v875
        %v880 = vmul.f32 %v860, %v876
        %v881 = vpack.c.bf16 %v674, %v674
        %v882 = vpack.c.bf16 %v676, %v676
        %v883 = vpack.c.bf16 %v679, %v679
        %v884 = vpack.c.bf16 %v681, %v681
        %v885 = vpack.c.bf16 %v877, %v877
        %v886 = vpack.c.bf16 %v878, %v878
        %v887 = vpack.c.bf16 %v879, %v879
        %v888 = vpack.c.bf16 %v880, %v880
        %v890 = vsel %vm707, %v881, 0
        %v893 = vsel %vm707, %v885, 0
        %895 = vmatpush.bf16.xpose.msra.mxu0 0
        %896 = vmatpush.bf16.xpose.msra.mxu0 0
        %897 = vmatpush.bf16.xpose.msra.mxu0 0
        %898 = vmatpush.bf16.xpose.msra.mxu0 0
        %899 = vmatpush.bf16.xpose.msra.mxu0 0
        %900 = vmatpush.bf16.xpose.msra.mxu0 0
        %901 = vmatpush.bf16.xpose.msra.mxu0 0
        %902 = vmatpush.bf16.xpose.msra.mxu0 %v893
        %903 = vmatmul.bf16.gmra.mxu0 %v890
        %v904 = vpop.f32.mrf.mxu0
        %v905 = vadd.f32 0.0, %v904
        %v906 = vpop.f32.mrf.mxu0
        %907 = vdwg.mxu0
        %v909 = vsel %vm707, %v882, 0
        %v912 = vsel %vm707, %v886, 0
        %914 = vmatpush.bf16.xpose.msra.mxu0 0
        %915 = vmatpush.bf16.xpose.msra.mxu0 0
        %916 = vmatpush.bf16.xpose.msra.mxu0 0
        %917 = vmatpush.bf16.xpose.msra.mxu0 0
        %918 = vmatpush.bf16.xpose.msra.mxu0 0
        %919 = vmatpush.bf16.xpose.msra.mxu0 0
        %920 = vmatpush.bf16.xpose.msra.mxu0 0
        %921 = vmatpush.bf16.xpose.msra.mxu0 %v912
        %922 = vmatmul.bf16.gmra.mxu0 %v909
        %v923 = vpop.f32.mrf.mxu0
        %v924 = vadd.f32 0.0, %v923
        %v925 = vpop.f32.mrf.mxu0
        %926 = vdwg.mxu0
        %v928 = vsel %vm707, %v883, 0
        %v931 = vsel %vm707, %v887, 0
        %933 = vmatpush.bf16.xpose.msra.mxu0 0
        %934 = vmatpush.bf16.xpose.msra.mxu0 0
        %935 = vmatpush.bf16.xpose.msra.mxu0 0
        %936 = vmatpush.bf16.xpose.msra.mxu0 0
        %937 = vmatpush.bf16.xpose.msra.mxu0 0
        %938 = vmatpush.bf16.xpose.msra.mxu0 0
        %939 = vmatpush.bf16.xpose.msra.mxu0 0
        %940 = vmatpush.bf16.xpose.msra.mxu0 %v931
        %941 = vmatmul.bf16.gmra.mxu0 %v928
        %v942 = vpop.f32.mrf.mxu0
        %v943 = vadd.f32 0.0, %v942
        %v944 = vpop.f32.mrf.mxu0
        %945 = vdwg.mxu0
        %v947 = vsel %vm707, %v884, 0
        %v950 = vsel %vm707, %v888, 0
        %952 = vmatpush.bf16.xpose.msra.mxu0 0
        %953 = vmatpush.bf16.xpose.msra.mxu0 0
        %954 = vmatpush.bf16.xpose.msra.mxu0 0
        %955 = vmatpush.bf16.xpose.msra.mxu0 0
        %956 = vmatpush.bf16.xpose.msra.mxu0 0
        %957 = vmatpush.bf16.xpose.msra.mxu0 0
        %958 = vmatpush.bf16.xpose.msra.mxu0 0
        %959 = vmatpush.bf16.xpose.msra.mxu0 %v950
        %960 = vmatmul.bf16.gmra.mxu0 %v947
        %v961 = vpop.f32.mrf.mxu0
        %v962 = vadd.f32 0.0, %v961
        %v963 = vpop.f32.mrf.mxu0
        %964 = vdwg.mxu0
        %965 = vxpose.xlu0.b32.start [1/16] %v905, 128
        %966 = vxpose.xlu0.b32.cont [2/16] %v924, 128
        %967 = vxpose.xlu0.b32.cont [3/16] %v943, 128
        %968 = vxpose.xlu0.b32.cont [4/16] %v962, 128
        %969 = vxpose.xlu0.b32.cont [5/16] 0.0, 128
        %970 = vxpose.xlu0.b32.cont [6/16] 0.0, 128
        %971 = vxpose.xlu0.b32.cont [7/16] 0.0, 128
        %972 = vxpose.xlu0.b32.cont [8/16] 0.0, 128
        %973 = vxpose.xlu0.b32.cont [9/16] 0.0, 128
        %974 = vxpose.xlu0.b32.cont [10/16] 0.0, 128
        %975 = vxpose.xlu0.b32.cont [11/16] 0.0, 128
        %976 = vxpose.xlu0.b32.cont [12/16] 0.0, 128
        %977 = vxpose.xlu0.b32.cont [13/16] 0.0, 128
        %978 = vxpose.xlu0.b32.cont [14/16] 0.0, 128
        %979 = vxpose.xlu0.b32.cont [15/16] 0.0, 128
        %980 = vxpose.xlu0.b32.end [16/16] 0.0, 128
        %v981 = vpop.trf.xlu0
        %v982 = vpop.trf.xlu0
        %v983 = vpop.trf.xlu0
        %v984 = vpop.trf.xlu0
        %v985 = vpop.trf.xlu0
        %v986 = vpop.trf.xlu0
        %v987 = vpop.trf.xlu0
        %v988 = vpop.trf.xlu0
        %v989 = vpop.trf.xlu0
        %v990 = vpop.trf.xlu0
        %v991 = vpop.trf.xlu0
        %v992 = vpop.trf.xlu0
        %v993 = vpop.trf.xlu0
        %v994 = vpop.trf.xlu0
        %v995 = vpop.trf.xlu0
        %v996 = vpop.trf.xlu0
        %v997 = vpack.c.bf16 %v981, %v981
        %v998 = vld [vmem:[%s5] sm:$0xf]
        %v999 = vld [vmem:[%s5 + $0x4] sm:$0xf]
        %v1000 = vld [vmem:[%s5 + $0x8] sm:$0xf]
        %v1001 = vld [vmem:[%s5 + $0xc] sm:$0xf]
        %v1002 = vld [vmem:[%s6] sm:$0x1]
        %v1004 = vperm.slane %v1002, 0
        %v1010 = vunpack.c.l.b16 %v998
        %v1011 = vunpack.c.l.b16 %v999
        %v1012 = vunpack.c.l.b16 %v1000
        %v1013 = vunpack.c.l.b16 %v1001
        %v1014 = vpack.c.b16 %v1011, %v1010
        %v1015 = vpack.c.b16 %v1013, %v1012
        %v1019 = vsel %vm440, %v997, 0
        %1021 = vmatpush.bf16.msra.mxu0 0
        %1022 = vmatpush.bf16.msra.mxu0 0
        %1023 = vmatpush.bf16.msra.mxu0 0
        %1024 = vmatpush.bf16.msra.mxu0 0
        %1025 = vmatpush.bf16.msra.mxu0 0
        %1026 = vmatpush.bf16.msra.mxu0 0
        %1027 = vmatpush.bf16.msra.mxu0 %v1015
        %1028 = vmatpush.bf16.msra.mxu0 %v1014
        %1029 = vmatmul.bf16.gmra.mxu0 %v1019
        %v1030 = vpop.f32.mrf.mxu0
        %v1031 = vadd.f32 %v1004, %v1030
        %v1032 = vpop.f32.mrf.mxu0
        %1033 = vdwg.mxu0
        %v1034 = vadd.f32 %v437, %v1031
        %v1035 = vld [vmem:[%s7] sm:$0x1]
        %v1036 = vld [vmem:[%s8] sm:$0x1]
        %v1037 = vsel %vm440, %v1034, 0.0
        %1038 = vadd.xlane.f32.xlu0 %v1037
        %v1039 = vpop.xlane.xlu0 %1038
        %v1040 = vmul.f32 %v1039, %v450
        %v1041 = vsub.f32 %v1034, %v1040
        %v1042 = vmul.f32 %v1041, %v1041
        %v1043 = vsel %vm440, %v1042, 0.0
        %1044 = vadd.xlane.f32.xlu0 %v1043
        %v1045 = vpop.xlane.xlu0 %1044
        %v1046 = vmul.f32 %v1045, %v450
        %v1047 = vadd.f32 %v1046, 1e-06
        %v1048 = vrsqrt.pop %v1047
        %v1049 = vmul.f32 %v1048, %v1047
        %v1050 = vmul.f32 %v1049, %v1048
        %v1051 = vmul.f32 0.5, %v1050
        %v1052 = vsub.f32 1.5, %v1051
        %v1053 = vmul.f32 %v1048, %v1052
        %vm1054 = vweird.f32 %v1047
        %vm1055 = vweird.f32 %v1048
        %vm1056 = vmor %vm1054, %vm1055
        %v1057 = vsel %vm1056, %v1048, %v1053
        %v1058 = vmul.f32 %v1041, %v1057
        %v1060 = vperm.slane %v1035, 0
        %v1062 = vmul.f32 %v1058, %v1060
        %v1064 = vperm.slane %v1036, 0
        %v1066 = vadd.f32 %v1062, %v1064
        %v1067 = vpack.c.bf16 %v1066, %v1066
        %v1068 = vld [vmem:[%s9] sm:$0xf]
        %v1069 = vld [vmem:[%s9 + $0x4] sm:$0xf]
        %v1070 = vld [vmem:[%s9 + $0x8] sm:$0xf]
        %v1071 = vld [vmem:[%s9 + $0xc] sm:$0xf]
        %v1072 = vld [vmem:[%s10] sm:$0x1]
        %v1074 = vperm.slane %v1072, 0
        %v1080 = vunpack.c.l.b16 %v1068
        %v1081 = vunpack.c.l.b16 %v1069
        %v1082 = vunpack.c.l.b16 %v1070
        %v1083 = vunpack.c.l.b16 %v1071
        %v1084 = vpack.c.b16 %v1081, %v1080
        %v1085 = vpack.c.b16 %v1083, %v1082
        %v1089 = vsel %vm440, %v1067, 0
        %1091 = vmatpush.bf16.msra.mxu0 0
        %1092 = vmatpush.bf16.msra.mxu0 0
        %1093 = vmatpush.bf16.msra.mxu0 0
        %1094 = vmatpush.bf16.msra.mxu0 0
        %1095 = vmatpush.bf16.msra.mxu0 0
        %1096 = vmatpush.bf16.msra.mxu0 0
        %1097 = vmatpush.bf16.msra.mxu0 %v1085
        %1098 = vmatpush.bf16.msra.mxu0 %v1084
        %1099 = vmatmul.bf16.gmra.mxu0 %v1089
        %v1100 = vpop.f32.mrf.mxu0
        %v1101 = vadd.f32 %v1074, %v1100
        %v1102 = vpop.f32.mrf.mxu0
        %1103 = vdwg.mxu0
        %v1104 = vmul.f32 %v1101, 0.5
        %v1105 = vmul.f32 %v1101, 0.044715
        %v1106 = vmul.f32 %v1105, %v1101
        %v1107 = vmul.f32 %v1106, %v1101
        %v1108 = vadd.f32 %v1101, %v1107
        %v1109 = vmul.f32 %v1108, 0.7978846
        %v1110 = vtanh.pop %v1109
        %v1111 = vadd.f32 %v1110, 1.0
        %v1112 = vmul.f32 %v1104, %v1111
        %v1113 = vpack.c.bf16 %v1112, %v1112
        %v1114 = vld [vmem:[%s11] sm:$0xf]
        %v1115 = vld [vmem:[%s11 + $0x4] sm:$0xf]
        %v1116 = vld [vmem:[%s11 + $0x8] sm:$0xf]
        %v1117 = vld [vmem:[%s11 + $0xc] sm:$0xf]
        %v1118 = vld [vmem:[%s11 + $0x10] sm:$0xf]
        %v1119 = vld [vmem:[%s11 + $0x14] sm:$0xf]
        %v1120 = vld [vmem:[%s11 + $0x18] sm:$0xf]
        %v1121 = vld [vmem:[%s11 + $0x1c] sm:$0xf]
        %v1122 = vld [vmem:[%s12] sm:$0x1]
        %v1124 = vperm.slane %v1122, 0
        %v1134 = vunpack.c.l.b16 %v1114
        %v1135 = vunpack.c.l.b16 %v1115
        %v1136 = vunpack.c.l.b16 %v1116
        %v1137 = vunpack.c.l.b16 %v1117
        %v1138 = vunpack.c.l.b16 %v1118
        %v1139 = vunpack.c.l.b16 %v1119
        %v1140 = vunpack.c.l.b16 %v1120
        %v1141 = vunpack.c.l.b16 %v1121
        %v1142 = vpack.c.b16 %v1135, %v1134
        %v1143 = vpack.c.b16 %v1137, %v1136
        %v1144 = vpack.c.b16 %v1139, %v1138
        %v1145 = vpack.c.b16 %v1141, %v1140
        %vm1150 = vcmask 523264
        %v1152 = vsel %vm1150, %v1113, 0
        %1154 = vmatpush.bf16.msra.mxu0 0
        %1155 = vmatpush.bf16.msra.mxu0 0
        %1156 = vmatpush.bf16.msra.mxu0 0
        %1157 = vmatpush.bf16.msra.mxu0 0
        %1158 = vmatpush.bf16.msra.mxu0 %v1145
        %1159 = vmatpush.bf16.msra.mxu0 %v1144
        %1160 = vmatpush.bf16.msra.mxu0 %v1143
        %1161 = vmatpush.bf16.msra.mxu0 %v1142
        %1162 = vmatmul.bf16.gmra.mxu0 %v1152
        %v1163 = vpop.f32.mrf.mxu0
        %v1164 = vadd.f32 %v1124, %v1163
        %v1165 = vpop.f32.mrf.mxu0
        %1166 = vdwg.mxu0
        %v1167 = vadd.f32 %v1034, %v1164
        %s1168 = scalar_lea.vmem %s1, 1
        %v1169 = vld [vmem:[%s1168] sm:$0x1]
        %s1170 = scalar_lea.vmem %s2, 1
        %v1171 = vld [vmem:[%s1170] sm:$0x1]
        %v1172 = vsel %vm440, %v1167, 0.0
        %1173 = vadd.xlane.f32.xlu0 %v1172
        %v1174 = vpop.xlane.xlu0 %1173
        %v1175 = vmul.f32 %v1174, %v450
        %v1176 = vsub.f32 %v1167, %v1175
        %v1177 = vmul.f32 %v1176, %v1176
        %v1178 = vsel %vm440, %v1177, 0.0
        %1179 = vadd.xlane.f32.xlu0 %v1178
        %v1180 = vpop.xlane.xlu0 %1179
        %v1181 = vmul.f32 %v1180, %v450
        %v1182 = vadd.f32 %v1181, 1e-06
        %v1183 = vrsqrt.pop %v1182
        %v1184 = vmul.f32 %v1183, %v1182
        %v1185 = vmul.f32 %v1184, %v1183
        %v1186 = vmul.f32 0.5, %v1185
        %v1187 = vsub.f32 1.5, %v1186
        %v1188 = vmul.f32 %v1183, %v1187
        %vm1189 = vweird.f32 %v1182
        %vm1190 = vweird.f32 %v1183
        %vm1191 = vmor %vm1189, %vm1190
        %v1192 = vsel %vm1191, %v1183, %v1188
        %v1193 = vmul.f32 %v1176, %v1192
        %v1195 = vperm.slane %v1169, 0
        %v1197 = vmul.f32 %v1193, %v1195
        %v1199 = vperm.slane %v1171, 0
        %v1201 = vadd.f32 %v1197, %v1199
        %1202 = vxpose.xlu0.b32.start [1/16] %v1201, 128
        %1203 = vxpose.xlu0.b32.cont [2/16] 0.0, 128
        %1204 = vxpose.xlu0.b32.cont [3/16] 0.0, 128
        %1205 = vxpose.xlu0.b32.cont [4/16] 0.0, 128
        %1206 = vxpose.xlu0.b32.cont [5/16] 0.0, 128
        %1207 = vxpose.xlu0.b32.cont [6/16] 0.0, 128
        %1208 = vxpose.xlu0.b32.cont [7/16] 0.0, 128
        %1209 = vxpose.xlu0.b32.cont [8/16] 0.0, 128
        %1210 = vxpose.xlu0.b32.cont [9/16] 0.0, 128
        %1211 = vxpose.xlu0.b32.cont [10/16] 0.0, 128
        %1212 = vxpose.xlu0.b32.cont [11/16] 0.0, 128
        %1213 = vxpose.xlu0.b32.cont [12/16] 0.0, 128
        %1214 = vxpose.xlu0.b32.cont [13/16] 0.0, 128
        %1215 = vxpose.xlu0.b32.cont [14/16] 0.0, 128
        %1216 = vxpose.xlu0.b32.cont [15/16] 0.0, 128
        %1217 = vxpose.xlu0.b32.end [16/16] 0.0, 128
        %v1218 = vpop.trf.xlu0
        %v1219 = vpop.trf.xlu0
        %v1220 = vpop.trf.xlu0
        %v1221 = vpop.trf.xlu0
        %v1222 = vpop.trf.xlu0
        %v1223 = vpop.trf.xlu0
        %v1224 = vpop.trf.xlu0
        %v1225 = vpop.trf.xlu0
        %v1226 = vpop.trf.xlu0
        %v1227 = vpop.trf.xlu0
        %v1228 = vpop.trf.xlu0
        %v1229 = vpop.trf.xlu0
        %v1230 = vpop.trf.xlu0
        %v1231 = vpop.trf.xlu0
        %v1232 = vpop.trf.xlu0
        %v1233 = vpop.trf.xlu0
        %s1234 = scalar_lea.vmem %s3, 48
        %v1235 = vld [vmem:[%s1234] sm:$0xf]
        %v1236 = vld [vmem:[%s1234 + $0x4] sm:$0xf]
        %v1237 = vld [vmem:[%s1234 + $0x8] sm:$0xf]
        %v1238 = vld [vmem:[%s1234 + $0xc] sm:$0xf]
        %v1239 = vld [vmem:[%s1234 + $0x10] sm:$0xf]
        %v1240 = vld [vmem:[%s1234 + $0x14] sm:$0xf]
        %v1241 = vld [vmem:[%s1234 + $0x18] sm:$0xf]
        %v1242 = vld [vmem:[%s1234 + $0x1c] sm:$0xf]
        %v1243 = vld [vmem:[%s1234 + $0x20] sm:$0xf]
        %v1244 = vld [vmem:[%s1234 + $0x24] sm:$0xf]
        %v1245 = vld [vmem:[%s1234 + $0x28] sm:$0xf]
        %v1246 = vld [vmem:[%s1234 + $0x2c] sm:$0xf]
        %v1247 = vpack.c.bf16 %v1219, %v1218
        %v1248 = vpack.c.bf16 %v1221, %v1220
        %s1249 = scalar_lea.vmem %s4, 96
        %v1250 = vld [vmem:[%s1249] sm:$0xff]
        %v1251 = vld [vmem:[%s1249 + $0x8] sm:$0xff]
        %v1252 = vld [vmem:[%s1249 + $0x10] sm:$0xff]
        %v1253 = vld [vmem:[%s1249 + $0x18] sm:$0xff]
        %v1254 = vld [vmem:[%s1249 + $0x20] sm:$0xff]
        %v1255 = vld [vmem:[%s1249 + $0x28] sm:$0xff]
        %v1256 = vld [vmem:[%s1249 + $0x30] sm:$0xff]
        %v1257 = vld [vmem:[%s1249 + $0x38] sm:$0xff]
        %v1258 = vld [vmem:[%s1249 + $0x40] sm:$0xff]
        %v1259 = vld [vmem:[%s1249 + $0x48] sm:$0xff]
        %v1260 = vld [vmem:[%s1249 + $0x50] sm:$0xff]
        %v1261 = vld [vmem:[%s1249 + $0x58] sm:$0xff]
        %1263 = vset.pattern.permute.xlu0 0
        %1264 = vperm.xlu0 %1263, %v1250
        %v1265 = vpop.permute.xlu0 %1264
        %1268 = vset.pattern.permute.xlu0 0
        %1269 = vperm.xlu0 %1268, %v1251
        %v1270 = vpop.permute.xlu0 %1269
        %1273 = vset.pattern.permute.xlu0 0
        %1274 = vperm.xlu0 %1273, %v1252
        %v1275 = vpop.permute.xlu0 %1274
        %1278 = vset.pattern.permute.xlu0 0
        %1279 = vperm.xlu0 %1278, %v1253
        %v1280 = vpop.permute.xlu0 %1279
        %1283 = vset.pattern.permute.xlu0 0
        %1284 = vperm.xlu0 %1283, %v1254
        %v1285 = vpop.permute.xlu0 %1284
        %1288 = vset.pattern.permute.xlu0 0
        %1289 = vperm.xlu0 %1288, %v1255
        %v1290 = vpop.permute.xlu0 %1289
        %1293 = vset.pattern.permute.xlu0 0
        %1294 = vperm.xlu0 %1293, %v1256
        %v1295 = vpop.permute.xlu0 %1294
        %1298 = vset.pattern.permute.xlu0 0
        %1299 = vperm.xlu0 %1298, %v1257
        %v1300 = vpop.permute.xlu0 %1299
        %1303 = vset.pattern.permute.xlu0 0
        %1304 = vperm.xlu0 %1303, %v1258
        %v1305 = vpop.permute.xlu0 %1304
        %1308 = vset.pattern.permute.xlu0 0
        %1309 = vperm.xlu0 %1308, %v1259
        %v1310 = vpop.permute.xlu0 %1309
        %1313 = vset.pattern.permute.xlu0 0
        %1314 = vperm.xlu0 %1313, %v1260
        %v1315 = vpop.permute.xlu0 %1314
        %1318 = vset.pattern.permute.xlu0 0
        %1319 = vperm.xlu0 %1318, %v1261
        %v1320 = vpop.permute.xlu0 %1319
        %v1334 = vunpack.c.l.b16 %v1235
        %v1335 = vunpack.c.l.b16 %v1236
        %v1336 = vunpack.c.l.b16 %v1237
        %v1337 = vunpack.c.l.b16 %v1238
        %v1338 = vunpack.c.l.b16 %v1239
        %v1339 = vunpack.c.l.b16 %v1240
        %v1340 = vunpack.c.l.b16 %v1241
        %v1341 = vunpack.c.l.b16 %v1242
        %v1342 = vunpack.c.l.b16 %v1243
        %v1343 = vunpack.c.l.b16 %v1244
        %v1344 = vunpack.c.l.b16 %v1245
        %v1345 = vunpack.c.l.b16 %v1246
        %v1346 = vpack.c.b16 %v1335, %v1334
        %v1347 = vpack.c.b16 %v1337, %v1336
        %v1348 = vpack.c.b16 %v1339, %v1338
        %v1349 = vpack.c.b16 %v1341, %v1340
        %v1350 = vpack.c.b16 %v1343, %v1342
        %v1351 = vpack.c.b16 %v1345, %v1344
        %v1353 = vsel %vm440, %v1346, 0
        %v1356 = vsel %vm440, %v1347, 0
        %v1359 = vsel %vm440, %v1348, 0
        %v1362 = vsel %vm440, %v1349, 0
        %v1365 = vsel %vm440, %v1350, 0
        %v1368 = vsel %vm440, %v1351, 0
        %1370 = vmatpush.bf16.msra.mxu0 0
        %1371 = vmatpush.bf16.msra.mxu0 0
        %1372 = vmatpush.bf16.msra.mxu0 0
        %1373 = vmatpush.bf16.msra.mxu0 0
        %1374 = vmatpush.bf16.msra.mxu0 0
        %1375 = vmatpush.bf16.msra.mxu0 0
        %1376 = vmatpush.bf16.msra.mxu0 %v1248
        %1377 = vmatpush.bf16.msra.mxu0 %v1247
        %1378 = vmatmul.bf16.gmra.mxu0 %v1353
        %v1379 = vpop.f32.mrf.mxu0
        %v1380 = vadd.f32 %v1265, %v1379
        %v1381 = vpop.f32.mrf.mxu0
        %v1382 = vadd.f32 %v1270, %v1381
        %1383 = vmatmul.bf16.gmra.mxu0 %v1356
        %v1384 = vpop.f32.mrf.mxu0
        %v1385 = vadd.f32 %v1275, %v1384
        %v1386 = vpop.f32.mrf.mxu0
        %v1387 = vadd.f32 %v1280, %v1386
        %1388 = vmatmul.bf16.gmra.mxu0 %v1359
        %v1389 = vpop.f32.mrf.mxu0
        %v1390 = vadd.f32 %v1285, %v1389
        %v1391 = vpop.f32.mrf.mxu0
        %v1392 = vadd.f32 %v1290, %v1391
        %1393 = vmatmul.bf16.gmra.mxu0 %v1362
        %v1394 = vpop.f32.mrf.mxu0
        %v1395 = vadd.f32 %v1295, %v1394
        %v1396 = vpop.f32.mrf.mxu0
        %v1397 = vadd.f32 %v1300, %v1396
        %1398 = vmatmul.bf16.gmra.mxu0 %v1365
        %v1399 = vpop.f32.mrf.mxu0
        %v1400 = vadd.f32 %v1305, %v1399
        %v1401 = vpop.f32.mrf.mxu0
        %v1402 = vadd.f32 %v1310, %v1401
        %1403 = vmatmul.bf16.gmra.mxu0 %v1368
        %v1404 = vpop.f32.mrf.mxu0
        %v1405 = vadd.f32 %v1315, %v1404
        %v1406 = vpop.f32.mrf.mxu0
        %v1407 = vadd.f32 %v1320, %v1406
        %1408 = vdwg.mxu0
        %v1409 = vpack.c.bf16 %v1380, %v1380
        %v1410 = vpack.c.bf16 %v1382, %v1382
        %v1411 = vpack.c.bf16 %v1385, %v1385
        %v1412 = vpack.c.bf16 %v1387, %v1387
        %v1413 = vpack.c.bf16 %v1390, %v1390
        %v1414 = vpack.c.bf16 %v1392, %v1392
        %v1415 = vpack.c.bf16 %v1395, %v1395
        %v1416 = vpack.c.bf16 %v1397, %v1397
        %1417 = vxpose.xlu0.c.b16.start [1/8] %v1409, 128
        %1418 = vxpose.xlu0.c.b16.cont [2/8] 0, 128
        %1419 = vxpose.xlu0.c.b16.cont [3/8] 0, 128
        %1420 = vxpose.xlu0.c.b16.cont [4/8] 0, 128
        %1421 = vxpose.xlu0.c.b16.cont [5/8] 0, 128
        %1422 = vxpose.xlu0.c.b16.cont [6/8] 0, 128
        %1423 = vxpose.xlu0.c.b16.cont [7/8] 0, 128
        %1424 = vxpose.xlu0.c.b16.end [8/8] 0, 128
        %v1425 = vpop.trf.xlu0
        %v1426 = vpop.trf.xlu0
        %v1427 = vpop.trf.xlu0
        %v1428 = vpop.trf.xlu0
        %v1429 = vpop.trf.xlu0
        %v1430 = vpop.trf.xlu0
        %v1431 = vpop.trf.xlu0
        %v1432 = vpop.trf.xlu0
        %v1434 = vsel %vm707, %v1425, 0
        %v1437 = vsel %vm711, %v1413, 0
        %1439 = vmatpush.bf16.msra.mxu0 0
        %1440 = vmatpush.bf16.msra.mxu0 0
        %1441 = vmatpush.bf16.msra.mxu0 0
        %1442 = vmatpush.bf16.msra.mxu0 0
        %1443 = vmatpush.bf16.msra.mxu0 0
        %1444 = vmatpush.bf16.msra.mxu0 0
        %1445 = vmatpush.bf16.msra.mxu0 0
        %1446 = vmatpush.bf16.msra.mxu0 %v1437
        %1447 = vmatmul.bf16.gmra.mxu0 %v1434
        %v1448 = vpop.f32.mrf.mxu0
        %v1449 = vadd.f32 0.0, %v1448
        %v1450 = vpop.f32.mrf.mxu0
        %1451 = vdwg.mxu0
        %1452 = vxpose.xlu0.c.b16.start [1/8] %v1410, 128
        %1453 = vxpose.xlu0.c.b16.cont [2/8] 0, 128
        %1454 = vxpose.xlu0.c.b16.cont [3/8] 0, 128
        %1455 = vxpose.xlu0.c.b16.cont [4/8] 0, 128
        %1456 = vxpose.xlu0.c.b16.cont [5/8] 0, 128
        %1457 = vxpose.xlu0.c.b16.cont [6/8] 0, 128
        %1458 = vxpose.xlu0.c.b16.cont [7/8] 0, 128
        %1459 = vxpose.xlu0.c.b16.end [8/8] 0, 128
        %v1460 = vpop.trf.xlu0
        %v1461 = vpop.trf.xlu0
        %v1462 = vpop.trf.xlu0
        %v1463 = vpop.trf.xlu0
        %v1464 = vpop.trf.xlu0
        %v1465 = vpop.trf.xlu0
        %v1466 = vpop.trf.xlu0
        %v1467 = vpop.trf.xlu0
        %v1469 = vsel %vm707, %v1460, 0
        %v1472 = vsel %vm711, %v1414, 0
        %1474 = vmatpush.bf16.msra.mxu0 0
        %1475 = vmatpush.bf16.msra.mxu0 0
        %1476 = vmatpush.bf16.msra.mxu0 0
        %1477 = vmatpush.bf16.msra.mxu0 0
        %1478 = vmatpush.bf16.msra.mxu0 0
        %1479 = vmatpush.bf16.msra.mxu0 0
        %1480 = vmatpush.bf16.msra.mxu0 0
        %1481 = vmatpush.bf16.msra.mxu0 %v1472
        %1482 = vmatmul.bf16.gmra.mxu0 %v1469
        %v1483 = vpop.f32.mrf.mxu0
        %v1484 = vadd.f32 0.0, %v1483
        %v1485 = vpop.f32.mrf.mxu0
        %1486 = vdwg.mxu0
        %1487 = vxpose.xlu0.c.b16.start [1/8] %v1411, 128
        %1488 = vxpose.xlu0.c.b16.cont [2/8] 0, 128
        %1489 = vxpose.xlu0.c.b16.cont [3/8] 0, 128
        %1490 = vxpose.xlu0.c.b16.cont [4/8] 0, 128
        %1491 = vxpose.xlu0.c.b16.cont [5/8] 0, 128
        %1492 = vxpose.xlu0.c.b16.cont [6/8] 0, 128
        %1493 = vxpose.xlu0.c.b16.cont [7/8] 0, 128
        %1494 = vxpose.xlu0.c.b16.end [8/8] 0, 128
        %v1495 = vpop.trf.xlu0
        %v1496 = vpop.trf.xlu0
        %v1497 = vpop.trf.xlu0
        %v1498 = vpop.trf.xlu0
        %v1499 = vpop.trf.xlu0
        %v1500 = vpop.trf.xlu0
        %v1501 = vpop.trf.xlu0
        %v1502 = vpop.trf.xlu0
        %v1504 = vsel %vm707, %v1495, 0
        %v1507 = vsel %vm711, %v1415, 0
        %1509 = vmatpush.bf16.msra.mxu0 0
        %1510 = vmatpush.bf16.msra.mxu0 0
        %1511 = vmatpush.bf16.msra.mxu0 0
        %1512 = vmatpush.bf16.msra.mxu0 0
        %1513 = vmatpush.bf16.msra.mxu0 0
        %1514 = vmatpush.bf16.msra.mxu0 0
        %1515 = vmatpush.bf16.msra.mxu0 0
        %1516 = vmatpush.bf16.msra.mxu0 %v1507
        %1517 = vmatmul.bf16.gmra.mxu0 %v1504
        %v1518 = vpop.f32.mrf.mxu0
        %v1519 = vadd.f32 0.0, %v1518
        %v1520 = vpop.f32.mrf.mxu0
        %1521 = vdwg.mxu0
        %1522 = vxpose.xlu0.c.b16.start [1/8] %v1412, 128
        %1523 = vxpose.xlu0.c.b16.cont [2/8] 0, 128
        %1524 = vxpose.xlu0.c.b16.cont [3/8] 0, 128
        %1525 = vxpose.xlu0.c.b16.cont [4/8] 0, 128
        %1526 = vxpose.xlu0.c.b16.cont [5/8] 0, 128
        %1527 = vxpose.xlu0.c.b16.cont [6/8] 0, 128
        %1528 = vxpose.xlu0.c.b16.cont [7/8] 0, 128
        %1529 = vxpose.xlu0.c.b16.end [8/8] 0, 128
        %v1530 = vpop.trf.xlu0
        %v1531 = vpop.trf.xlu0
        %v1532 = vpop.trf.xlu0
        %v1533 = vpop.trf.xlu0
        %v1534 = vpop.trf.xlu0
        %v1535 = vpop.trf.xlu0
        %v1536 = vpop.trf.xlu0
        %v1537 = vpop.trf.xlu0
        %v1539 = vsel %vm707, %v1530, 0
        %v1542 = vsel %vm711, %v1416, 0
        %1544 = vmatpush.bf16.msra.mxu0 0
        %1545 = vmatpush.bf16.msra.mxu0 0
        %1546 = vmatpush.bf16.msra.mxu0 0
        %1547 = vmatpush.bf16.msra.mxu0 0
        %1548 = vmatpush.bf16.msra.mxu0 0
        %1549 = vmatpush.bf16.msra.mxu0 0
        %1550 = vmatpush.bf16.msra.mxu0 0
        %1551 = vmatpush.bf16.msra.mxu0 %v1542
        %1552 = vmatmul.bf16.gmra.mxu0 %v1539
        %v1553 = vpop.f32.mrf.mxu0
        %v1554 = vadd.f32 0.0, %v1553
        %v1555 = vpop.f32.mrf.mxu0
        %1556 = vdwg.mxu0
        %v1557 = vmul.f32 %v1449, 0.35355338
        %v1558 = vmul.f32 %v1484, 0.35355338
        %v1559 = vmul.f32 %v1519, 0.35355338
        %v1560 = vmul.f32 %v1554, 0.35355338
        %v1561 = vsel %vm707, %v1557, -inf
        %1562 = vmax.xlane.f32.xlu0 %v1561
        %v1563 = vpop.xlane.xlu0 %1562
        %v1564 = vsel %vm707, %v1558, -inf
        %1565 = vmax.xlane.f32.xlu0 %v1564
        %v1566 = vpop.xlane.xlu0 %1565
        %v1567 = vsel %vm707, %v1559, -inf
        %1568 = vmax.xlane.f32.xlu0 %v1567
        %v1569 = vpop.xlane.xlu0 %1568
        %v1570 = vsel %vm707, %v1560, -inf
        %1571 = vmax.xlane.f32.xlu0 %v1570
        %v1572 = vpop.xlane.xlu0 %1571
        %v1573 = vsub.f32 %v1557, %v1563
        %v1574 = vsub.f32 %v1558, %v1566
        %v1575 = vsub.f32 %v1559, %v1569
        %v1576 = vsub.f32 %v1560, %v1572
        %v1577 = vmul.f32 %v1573, 1.442695
        %v1578 = vpow.pop %v1577
        %v1579 = vmul.f32 %v1574, 1.442695
        %v1580 = vpow.pop %v1579
        %v1581 = vmul.f32 %v1575, 1.442695
        %v1582 = vpow.pop %v1581
        %v1583 = vmul.f32 %v1576, 1.442695
        %v1584 = vpow.pop %v1583
        %v1585 = vsel %vm707, %v1578, 0.0
        %1586 = vadd.xlane.f32.xlu0 %v1585
        %v1587 = vpop.xlane.xlu0 %1586
        %v1588 = vsel %vm707, %v1580, 0.0
        %1589 = vadd.xlane.f32.xlu0 %v1588
        %v1590 = vpop.xlane.xlu0 %1589
        %v1591 = vsel %vm707, %v1582, 0.0
        %1592 = vadd.xlane.f32.xlu0 %v1591
        %v1593 = vpop.xlane.xlu0 %1592
        %v1594 = vsel %vm707, %v1584, 0.0
        %1595 = vadd.xlane.f32.xlu0 %v1594
        %v1596 = vpop.xlane.xlu0 %1595
        %v1597 = vrcp.pop %v1587
        %v1598 = vrcp.pop %v1590
        %v1599 = vrcp.pop %v1593
        %v1600 = vrcp.pop %v1596
        %v1601 = vmul.f32 %v1578, %v1597
        %v1602 = vmul.f32 %v1580, %v1598
        %v1603 = vmul.f32 %v1582, %v1599
        %v1604 = vmul.f32 %v1584, %v1600
        %v1605 = vpack.c.bf16 %v1400, %v1400
        %v1606 = vpack.c.bf16 %v1402, %v1402
        %v1607 = vpack.c.bf16 %v1405, %v1405
        %v1608 = vpack.c.bf16 %v1407, %v1407
        %v1609 = vpack.c.bf16 %v1601, %v1601
        %v1610 = vpack.c.bf16 %v1602, %v1602
        %v1611 = vpack.c.bf16 %v1603, %v1603
        %v1612 = vpack.c.bf16 %v1604, %v1604
        %v1614 = vsel %vm707, %v1605, 0
        %v1617 = vsel %vm707, %v1609, 0
        %1619 = vmatpush.bf16.xpose.msra.mxu0 0
        %1620 = vmatpush.bf16.xpose.msra.mxu0 0
        %1621 = vmatpush.bf16.xpose.msra.mxu0 0
        %1622 = vmatpush.bf16.xpose.msra.mxu0 0
        %1623 = vmatpush.bf16.xpose.msra.mxu0 0
        %1624 = vmatpush.bf16.xpose.msra.mxu0 0
        %1625 = vmatpush.bf16.xpose.msra.mxu0 0
        %1626 = vmatpush.bf16.xpose.msra.mxu0 %v1617
        %1627 = vmatmul.bf16.gmra.mxu0 %v1614
        %v1628 = vpop.f32.mrf.mxu0
        %v1629 = vadd.f32 0.0, %v1628
        %v1630 = vpop.f32.mrf.mxu0
        %1631 = vdwg.mxu0
        %v1633 = vsel %vm707, %v1606, 0
        %v1636 = vsel %vm707, %v1610, 0
        %1638 = vmatpush.bf16.xpose.msra.mxu0 0
        %1639 = vmatpush.bf16.xpose.msra.mxu0 0
        %1640 = vmatpush.bf16.xpose.msra.mxu0 0
        %1641 = vmatpush.bf16.xpose.msra.mxu0 0
        %1642 = vmatpush.bf16.xpose.msra.mxu0 0
        %1643 = vmatpush.bf16.xpose.msra.mxu0 0
        %1644 = vmatpush.bf16.xpose.msra.mxu0 0
        %1645 = vmatpush.bf16.xpose.msra.mxu0 %v1636
        %1646 = vmatmul.bf16.gmra.mxu0 %v1633
        %v1647 = vpop.f32.mrf.mxu0
        %v1648 = vadd.f32 0.0, %v1647
        %v1649 = vpop.f32.mrf.mxu0
        %1650 = vdwg.mxu0
        %v1652 = vsel %vm707, %v1607, 0
        %v1655 = vsel %vm707, %v1611, 0
        %1657 = vmatpush.bf16.xpose.msra.mxu0 0
        %1658 = vmatpush.bf16.xpose.msra.mxu0 0
        %1659 = vmatpush.bf16.xpose.msra.mxu0 0
        %1660 = vmatpush.bf16.xpose.msra.mxu0 0
        %1661 = vmatpush.bf16.xpose.msra.mxu0 0
        %1662 = vmatpush.bf16.xpose.msra.mxu0 0
        %1663 = vmatpush.bf16.xpose.msra.mxu0 0
        %1664 = vmatpush.bf16.xpose.msra.mxu0 %v1655
        %1665 = vmatmul.bf16.gmra.mxu0 %v1652
        %v1666 = vpop.f32.mrf.mxu0
        %v1667 = vadd.f32 0.0, %v1666
        %v1668 = vpop.f32.mrf.mxu0
        %1669 = vdwg.mxu0
        %v1671 = vsel %vm707, %v1608, 0
        %v1674 = vsel %vm707, %v1612, 0
        %1676 = vmatpush.bf16.xpose.msra.mxu0 0
        %1677 = vmatpush.bf16.xpose.msra.mxu0 0
        %1678 = vmatpush.bf16.xpose.msra.mxu0 0
        %1679 = vmatpush.bf16.xpose.msra.mxu0 0
        %1680 = vmatpush.bf16.xpose.msra.mxu0 0
        %1681 = vmatpush.bf16.xpose.msra.mxu0 0
        %1682 = vmatpush.bf16.xpose.msra.mxu0 0
        %1683 = vmatpush.bf16.xpose.msra.mxu0 %v1674
        %1684 = vmatmul.bf16.gmra.mxu0 %v1671
        %v1685 = vpop.f32.mrf.mxu0
        %v1686 = vadd.f32 0.0, %v1685
        %v1687 = vpop.f32.mrf.mxu0
        %1688 = vdwg.mxu0
        %1689 = vxpose.xlu0.b32.start [1/16] %v1629, 128
        %1690 = vxpose.xlu0.b32.cont [2/16] %v1648, 128
        %1691 = vxpose.xlu0.b32.cont [3/16] %v1667, 128
        %1692 = vxpose.xlu0.b32.cont [4/16] %v1686, 128
        %1693 = vxpose.xlu0.b32.cont [5/16] 0.0, 128
        %1694 = vxpose.xlu0.b32.cont [6/16] 0.0, 128
        %1695 = vxpose.xlu0.b32.cont [7/16] 0.0, 128
        %1696 = vxpose.xlu0.b32.cont [8/16] 0.0, 128
        %1697 = vxpose.xlu0.b32.cont [9/16] 0.0, 128
        %1698 = vxpose.xlu0.b32.cont [10/16] 0.0, 128
        %1699 = vxpose.xlu0.b32.cont [11/16] 0.0, 128
        %1700 = vxpose.xlu0.b32.cont [12/16] 0.0, 128
        %1701 = vxpose.xlu0.b32.cont [13/16] 0.0, 128
        %1702 = vxpose.xlu0.b32.cont [14/16] 0.0, 128
        %1703 = vxpose.xlu0.b32.cont [15/16] 0.0, 128
        %1704 = vxpose.xlu0.b32.end [16/16] 0.0, 128
        %v1705 = vpop.trf.xlu0
        %v1706 = vpop.trf.xlu0
        %v1707 = vpop.trf.xlu0
        %v1708 = vpop.trf.xlu0
        %v1709 = vpop.trf.xlu0
        %v1710 = vpop.trf.xlu0
        %v1711 = vpop.trf.xlu0
        %v1712 = vpop.trf.xlu0
        %v1713 = vpop.trf.xlu0
        %v1714 = vpop.trf.xlu0
        %v1715 = vpop.trf.xlu0
        %v1716 = vpop.trf.xlu0
        %v1717 = vpop.trf.xlu0
        %v1718 = vpop.trf.xlu0
        %v1719 = vpop.trf.xlu0
        %v1720 = vpop.trf.xlu0
        %v1721 = vpack.c.bf16 %v1705, %v1705
        %s1722 = scalar_lea.vmem %s5, 16
        %v1723 = vld [vmem:[%s1722] sm:$0xf]
        %v1724 = vld [vmem:[%s1722 + $0x4] sm:$0xf]
        %v1725 = vld [vmem:[%s1722 + $0x8] sm:$0xf]
        %v1726 = vld [vmem:[%s1722 + $0xc] sm:$0xf]
        %s1727 = scalar_lea.vmem %s6, 1
        %v1728 = vld [vmem:[%s1727] sm:$0x1]
        %v1730 = vperm.slane %v1728, 0
        %v1736 = vunpack.c.l.b16 %v1723
        %v1737 = vunpack.c.l.b16 %v1724
        %v1738 = vunpack.c.l.b16 %v1725
        %v1739 = vunpack.c.l.b16 %v1726
        %v1740 = vpack.c.b16 %v1737, %v1736
        %v1741 = vpack.c.b16 %v1739, %v1738
        %v1745 = vsel %vm440, %v1721, 0
        %1747 = vmatpush.bf16.msra.mxu0 0
        %1748 = vmatpush.bf16.msra.mxu0 0
        %1749 = vmatpush.bf16.msra.mxu0 0
        %1750 = vmatpush.bf16.msra.mxu0 0
        %1751 = vmatpush.bf16.msra.mxu0 0
        %1752 = vmatpush.bf16.msra.mxu0 0
        %1753 = vmatpush.bf16.msra.mxu0 %v1741
        %1754 = vmatpush.bf16.msra.mxu0 %v1740
        %1755 = vmatmul.bf16.gmra.mxu0 %v1745
        %v1756 = vpop.f32.mrf.mxu0
        %v1757 = vadd.f32 %v1730, %v1756
        %v1758 = vpop.f32.mrf.mxu0
        %1759 = vdwg.mxu0
        %v1760 = vadd.f32 %v1167, %v1757
        %s1761 = scalar_lea.vmem %s7, 1
        %v1762 = vld [vmem:[%s1761] sm:$0x1]
        %s1763 = scalar_lea.vmem %s8, 1
        %v1764 = vld [vmem:[%s1763] sm:$0x1]
        %v1765 = vsel %vm440, %v1760, 0.0
        %1766 = vadd.xlane.f32.xlu0 %v1765
        %v1767 = vpop.xlane.xlu0 %1766
        %v1768 = vmul.f32 %v1767, %v450
        %v1769 = vsub.f32 %v1760, %v1768
        %v1770 = vmul.f32 %v1769, %v1769
        %v1771 = vsel %vm440, %v1770, 0.0
        %1772 = vadd.xlane.f32.xlu0 %v1771
        %v1773 = vpop.xlane.xlu0 %1772
        %v1774 = vmul.f32 %v1773, %v450
        %v1775 = vadd.f32 %v1774, 1e-06
        %v1776 = vrsqrt.pop %v1775
        %v1777 = vmul.f32 %v1776, %v1775
        %v1778 = vmul.f32 %v1777, %v1776
        %v1779 = vmul.f32 0.5, %v1778
        %v1780 = vsub.f32 1.5, %v1779
        %v1781 = vmul.f32 %v1776, %v1780
        %vm1782 = vweird.f32 %v1775
        %vm1783 = vweird.f32 %v1776
        %vm1784 = vmor %vm1782, %vm1783
        %v1785 = vsel %vm1784, %v1776, %v1781
        %v1786 = vmul.f32 %v1769, %v1785
        %v1788 = vperm.slane %v1762, 0
        %v1790 = vmul.f32 %v1786, %v1788
        %v1792 = vperm.slane %v1764, 0
        %v1794 = vadd.f32 %v1790, %v1792
        %v1795 = vpack.c.bf16 %v1794, %v1794
        %s1796 = scalar_lea.vmem %s9, 16
        %v1797 = vld [vmem:[%s1796] sm:$0xf]
        %v1798 = vld [vmem:[%s1796 + $0x4] sm:$0xf]
        %v1799 = vld [vmem:[%s1796 + $0x8] sm:$0xf]
        %v1800 = vld [vmem:[%s1796 + $0xc] sm:$0xf]
        %s1801 = scalar_lea.vmem %s10, 1
        %v1802 = vld [vmem:[%s1801] sm:$0x1]
        %v1804 = vperm.slane %v1802, 0
        %v1810 = vunpack.c.l.b16 %v1797
        %v1811 = vunpack.c.l.b16 %v1798
        %v1812 = vunpack.c.l.b16 %v1799
        %v1813 = vunpack.c.l.b16 %v1800
        %v1814 = vpack.c.b16 %v1811, %v1810
        %v1815 = vpack.c.b16 %v1813, %v1812
        %v1819 = vsel %vm440, %v1795, 0
        %1821 = vmatpush.bf16.msra.mxu0 0
        %1822 = vmatpush.bf16.msra.mxu0 0
        %1823 = vmatpush.bf16.msra.mxu0 0
        %1824 = vmatpush.bf16.msra.mxu0 0
        %1825 = vmatpush.bf16.msra.mxu0 0
        %1826 = vmatpush.bf16.msra.mxu0 0
        %1827 = vmatpush.bf16.msra.mxu0 %v1815
        %1828 = vmatpush.bf16.msra.mxu0 %v1814
        %1829 = vmatmul.bf16.gmra.mxu0 %v1819
        %v1830 = vpop.f32.mrf.mxu0
        %v1831 = vadd.f32 %v1804, %v1830
        %v1832 = vpop.f32.mrf.mxu0
        %1833 = vdwg.mxu0
        %v1834 = vmul.f32 %v1831, 0.5
        %v1835 = vmul.f32 %v1831, 0.044715
        %v1836 = vmul.f32 %v1835, %v1831
        %v1837 = vmul.f32 %v1836, %v1831
        %v1838 = vadd.f32 %v1831, %v1837
        %v1839 = vmul.f32 %v1838, 0.7978846
        %v1840 = vtanh.pop %v1839
        %v1841 = vadd.f32 %v1840, 1.0
        %v1842 = vmul.f32 %v1834, %v1841
        %v1843 = vpack.c.bf16 %v1842, %v1842
        %s1844 = scalar_lea.vmem %s11, 32
        %v1845 = vld [vmem:[%s1844] sm:$0xf]
        %v1846 = vld [vmem:[%s1844 + $0x4] sm:$0xf]
        %v1847 = vld [vmem:[%s1844 + $0x8] sm:$0xf]
        %v1848 = vld [vmem:[%s1844 + $0xc] sm:$0xf]
        %v1849 = vld [vmem:[%s1844 + $0x10] sm:$0xf]
        %v1850 = vld [vmem:[%s1844 + $0x14] sm:$0xf]
        %v1851 = vld [vmem:[%s1844 + $0x18] sm:$0xf]
        %v1852 = vld [vmem:[%s1844 + $0x1c] sm:$0xf]
        %s1853 = scalar_lea.vmem %s12, 1
        %v1854 = vld [vmem:[%s1853] sm:$0x1]
        %v1856 = vperm.slane %v1854, 0
        %v1866 = vunpack.c.l.b16 %v1845
        %v1867 = vunpack.c.l.b16 %v1846
        %v1868 = vunpack.c.l.b16 %v1847
        %v1869 = vunpack.c.l.b16 %v1848
        %v1870 = vunpack.c.l.b16 %v1849
        %v1871 = vunpack.c.l.b16 %v1850
        %v1872 = vunpack.c.l.b16 %v1851
        %v1873 = vunpack.c.l.b16 %v1852
        %v1874 = vpack.c.b16 %v1867, %v1866
        %v1875 = vpack.c.b16 %v1869, %v1868
        %v1876 = vpack.c.b16 %v1871, %v1870
        %v1877 = vpack.c.b16 %v1873, %v1872
        %v1883 = vsel %vm1150, %v1843, 0
        %1885 = vmatpush.bf16.msra.mxu0 0
        %1886 = vmatpush.bf16.msra.mxu0 0
        %1887 = vmatpush.bf16.msra.mxu0 0
        %1888 = vmatpush.bf16.msra.mxu0 0
        %1889 = vmatpush.bf16.msra.mxu0 %v1877
        %1890 = vmatpush.bf16.msra.mxu0 %v1876
        %1891 = vmatpush.bf16.msra.mxu0 %v1875
        %1892 = vmatpush.bf16.msra.mxu0 %v1874
        %1893 = vmatmul.bf16.gmra.mxu0 %v1883
        %v1894 = vpop.f32.mrf.mxu0
        %v1895 = vadd.f32 %v1856, %v1894
        %v1896 = vpop.f32.mrf.mxu0
        %1897 = vdwg.mxu0
        %v1898 = vadd.f32 %v1760, %v1895
        %1899 = vst.msk [vmem:[%s431] sm:$0xff] %vm440, %v1898
        %s1900 = sand.u32 %s313, 1
        %s1901 = scalar_lea.sflag [#allocation3], %s1900
        %s1902 = sand.u32 %s313, 1
        %s1903 = smul.addr %s1902, 8
        %s1904 = scalar_lea.vmem [#allocation2], %s1903
        // Predicated region
        $region73: #{siglip_encoder.1} parent=71 // pred_check
          %p1905 = pneg %p323
        $region74: #{siglip_encoder.1} parent=71 // pred_check_branch
          %1907 = sbr.rel (%p1905) target = $region76
        $region75: #{siglip_encoder.1} parent=71 // pred_region
          %1909 = vsyncadd %s1901, 0
          %s1910 = smul.addr %s27, 8
          %s1911 = scalar_lea.hbm %s13, %s1910
          %s1913 = sshll.u32 %s1904, 4
          %s1914 = int_to_ptr.vmem [resolvable:$true] %s1913
          %s1915 = sshll.u32 %s1911, 4
          %s1916 = int_to_ptr.hbm [resolvable:$true] %s1915
          %1918 = dma.vmem_to_hbm [thread:$0]  %s1914, 128, %s1916, %s1901
        $region76: #{siglip_encoder.1} parent=71 // pred_fallthru
          _
      $region72: #{siglip_encoder.1} parent=5 // pred_fallthru
        _
      %p1919 = scmp.le.s32.totalorder 2, %s22
      // Predicated region
      $region77: #{siglip_encoder.1} parent=5 // pred_check
        %p1920 = pneg %p1919
      $region78: #{siglip_encoder.1} parent=5 // pred_check_branch
        %1922 = sbr.rel (%p1920) target = $region80
      $region79: #{siglip_encoder.1} parent=5 // pred_region
        %s1923 = ssub.s32 %s22, 2
        // Predicated region
        $region81: #{siglip_encoder.1} parent=79 // pred_check
          %p1924 = pneg %p329
        $region82: #{siglip_encoder.1} parent=79 // pred_check_branch
          %1926 = sbr.rel (%p1924) target = $region84
        $region83: #{siglip_encoder.1} parent=79 // pred_region
          %s1927 = sand.u32 %s314, 1
          %s1928 = scalar_lea.sflag [#allocation3], %s1927
          %s1929 = sand.u32 %s314, 1
          %s1930 = smul.addr %s1929, 8
          %s1931 = scalar_lea.vmem [#allocation2], %s1930
          %1933 = dma.done %s1928, 128
        $region84: #{siglip_encoder.1} parent=79 // pred_fallthru
          _
      $region80: #{siglip_encoder.1} parent=5 // pred_fallthru
        _
    $region6: #{siglip_encoder.1} parent=1 // loop_footer
      %s26 = sadd.s32 1, %s22
    $region7: #{siglip_encoder.1} parent=1 // loop_footer_branch
      %21 = sbr.rel target = $region3
    $region8: #{siglip_encoder.1} parent=1 // loop_exit
      _
    %1934 = vsyncpa [#allocation3], 1
    %s1935 = scalar_lea.sflag [#allocation3], 1
    %1936 = vsyncpa %s1935, 1

</llo_original>
